<compile_context>
chip_gen: v7x
topology: tpu7x:2x2x1
jax: 0.10.0
libtpu: 0.0.40
codegen_flags: <defaults>
</compile_context>

<pallas_src>
import functools
import math

import jax
import jax.numpy as jnp
from jax.experimental import pallas as pl
from jax.experimental.pallas import tpu as pltpu


def _round_up(n, m):
    return ((n + m - 1) // m) * m


def _mha_kernel(x_ref, encx_ref, ency_ref, bias_ref,
                wq_ref, bq_ref, wk_ref, bk_ref, wv_ref, bv_ref, wo_ref, bo_ref,
                out_ref, attn_ref, *, num_heads):
    """One grid step = one batch block; ALL heads fused (wide MXU matmuls, single write)."""
    bb, tq, d_q_in = x_ref.shape
    _, tk, d_kv = encx_ref.shape
    d_model = wq_ref.shape[1]
    d_k = d_model // num_heads

    # Flatten the batch block into the M dimension of the projection matmuls.
    xf = x_ref[...].reshape(bb * tq, d_q_in)
    kf = encx_ref[...].reshape(bb * tk, d_kv)
    vf = ency_ref[...].reshape(bb * tk, d_kv)

    # Full-width (N = d_model) projections; 1/sqrt(d_k) is folded into Wq/bq by the wrapper.
    q = jnp.dot(xf, wq_ref[...], preferred_element_type=jnp.float32) + bq_ref[...]
    k = jnp.dot(kf, wk_ref[...], preferred_element_type=jnp.float32) + bk_ref[...]
    v = jnp.dot(vf, wv_ref[...], preferred_element_type=jnp.float32) + bv_ref[...]

    # bf16 operands for the attention matmuls (MXU-native), f32 accumulation.
    q3 = q.reshape(bb, tq, d_model).astype(jnp.bfloat16)
    k3 = k.reshape(bb, tk, d_model).astype(jnp.bfloat16)
    v3 = v.reshape(bb, tk, d_model).astype(jnp.bfloat16)

    # Additive key-padding bias (0 valid / -1e9 padded), precomputed in the wrapper.
    bias = bias_ref[...]                                        # (bb, 1, tk)

    attn_sum = jnp.zeros((bb, tq, tk), jnp.float32)
    ctx_heads = []
    for h in range(num_heads):                                  # static unroll over heads
        sl = slice(h * d_k, (h + 1) * d_k)                      # per-head lane slice
        qh, kh, vh = q3[:, :, sl], k3[:, :, sl], v3[:, :, sl]

        s = jnp.einsum('bqd,bkd->bqk', qh, kh,
                       preferred_element_type=jnp.float32) + bias          # (bb, tq, tk)
        m = jnp.max(s, axis=-1, keepdims=True)
        p = jnp.exp(s - m)
        denom = jnp.sum(p, axis=-1, keepdims=True)
        # Exact reciprocal: the probabilities feed the user-visible attention scores.
        pn = p * pl.reciprocal(denom, approx=False)

        attn_sum = attn_sum + pn
        ctx_heads.append(jnp.einsum('bqk,bkd->bqd', pn.astype(jnp.bfloat16), vh,
                                    preferred_element_type=jnp.float32))   # (bb, tq, d_k)

    # Mean over heads, scaled once at the end (deferred 1/H).
    attn_ref[...] = (attn_sum * (1.0 / num_heads)).astype(attn_ref.dtype)

    # Single output projection with K = d_model (full MXU fill instead of H K=16 matmuls).
    ctx = jnp.concatenate(ctx_heads, axis=-1).reshape(bb * tq, d_model)
    out = jnp.dot(ctx.astype(jnp.bfloat16), wo_ref[...],
                  preferred_element_type=jnp.float32) + bo_ref[...]
    out_ref[...] = out.reshape(bb, tq, out_ref.shape[-1]).astype(out_ref.dtype)


def _pick_batch_block(batch, tq, tk, d_q_in, d_kv, d_q_pad, d_model,
                      m_target=256, vmem_budget_bytes=32 * 1024 * 1024):
    """VMEM-aware batch-block size.

    Targets ~256 rows of M per matmul (v6e/v7x MXU; also fine on v5e), keeps nb >= 2 so the
    'parallel' batch axis can shard across v7x's two TensorCores, and bounds the estimated
    VMEM footprint (double-buffered blocks + live f32 intermediates)."""
    bb = max(1, min(batch, max(1, m_target // max(tq, 1))))
    if batch >= 2:
        bb = min(bb, batch // 2)
        bb = max(bb, 1)

    def fits(b):
        f = 4
        dbl_in = 2 * f * b * (tq * d_q_in + tk * (2 * d_kv + 1))
        dbl_out = 2 * f * b * tq * (d_q_pad + tk)
        live = f * b * (tq + 2 * tk) * d_model + 4 * f * b * tq * tk + f * b * tq * d_model
        return dbl_in + dbl_out + live <= vmem_budget_bytes

    while bb > 1 and (batch % bb != 0 or not fits(bb)):
        bb -= 1
    return bb


def prepare_encoder_attention_params(params, *, num_heads):
    """One-time parameter prep (call when parameters are loaded, NOT per forward call)."""
    d_q_in, d_model = params["wq"].shape
    assert d_model % num_heads == 0
    d_k = d_model // num_heads
    scale = 1.0 / math.sqrt(d_k)
    d_q_out = params["wo"].shape[1]
    d_q_pad = _round_up(d_q_out, 128)          # lane-dense output store

    prep = {
        "wq": (params["wq"] * scale).astype(jnp.float32),                  # scale folded in
        "bq": (params["bq"] * scale).reshape(1, d_model).astype(jnp.float32),
        "wk": params["wk"].astype(jnp.float32),
        "bk": params["bk"].reshape(1, d_model).astype(jnp.float32),
        "wv": params["wv"].astype(jnp.float32),
        "bv": params["bv"].reshape(1, d_model).astype(jnp.float32),
        # bf16 output-projection weight (kernel feeds it bf16 ctx), zero-padded to d_q_pad.
        "wo": jnp.pad(params["wo"], ((0, 0), (0, d_q_pad - d_q_out))).astype(jnp.bfloat16),
        "bo": jnp.pad(params["bo"].reshape(1, d_q_out),
                      ((0, 0), (0, d_q_pad - d_q_out))).astype(jnp.float32),
    }
    meta = dict(num_heads=num_heads, d_model=d_model,
                d_q_in=d_q_in, d_q_out=d_q_out, d_q_pad=d_q_pad)
    return prep, meta


def encoder_attention_op(x, enc_x, enc_y, src_mask, prep, meta, *, batch_block=None):
    """Pallas-backed EncoderAttentionOp.forward: returns (output, mean attention scores)."""
    B, Tq, d_q_in = x.shape
    _, Tk, d_kv = enc_x.shape
    num_heads = meta["num_heads"]
    d_model = meta["d_model"]
    d_q_out = meta["d_q_out"]
    d_q_pad = meta["d_q_pad"]
    assert d_q_in == meta["d_q_in"]

    # Pad time axes: Tq -> sublane multiple, Tk -> lane multiple (lane-dense attn store).
    tq_p = _round_up(Tq, 8)
    tk_p = _round_up(Tk, 128)
    x_p = jnp.pad(x, ((0, 0), (0, tq_p - Tq), (0, 0)))
    encx_p = jnp.pad(enc_x, ((0, 0), (0, tk_p - Tk), (0, 0)))
    ency_p = jnp.pad(enc_y, ((0, 0), (0, tk_p - Tk), (0, 0)))

    # Additive key-padding bias precomputed once (padded key positions are masked off).
    mask_p = jnp.pad(src_mask.astype(jnp.float32), ((0, 0), (0, tk_p - Tk)))
    bias = jnp.where(mask_p > 0.5, 0.0, -1e9).astype(jnp.float32).reshape(B, 1, tk_p)

    bb = batch_block if batch_block is not None else _pick_batch_block(
        B, tq_p, tk_p, d_q_in, d_kv, d_q_pad, d_model)
    assert B % bb == 0
    nb = B // bb

    kernel = functools.partial(_mha_kernel, num_heads=num_heads)

    batch_blk = lambda shp: pl.BlockSpec(shp, lambda i: (i, 0, 0))   # varies with batch block
    const2d = lambda shp: pl.BlockSpec(shp, lambda i: (0, 0))        # whole weight, constant

    out, attn = pl.pallas_call(
        kernel,
        out_shape=(jax.ShapeDtypeStruct((B, tq_p, d_q_pad), jnp.float32),
                   jax.ShapeDtypeStruct((B, tq_p, tk_p), jnp.float32)),
        grid_spec=pltpu.PrefetchScalarGridSpec(
            num_scalar_prefetch=0,
            grid=(nb,),                                   # batch blocks only; heads fused
            in_specs=[
                batch_blk((bb, tq_p, d_q_in)),            # x
                batch_blk((bb, tk_p, d_kv)),              # encoder_state['x']
                batch_blk((bb, tk_p, d_kv)),              # encoder_state['y']
                batch_blk((bb, 1, tk_p)),                 # additive mask bias
                const2d((d_q_in, d_model)), const2d((1, d_model)),   # Wq (pre-scaled), bq
                const2d((d_kv, d_model)),   const2d((1, d_model)),   # Wk, bk
                const2d((d_kv, d_model)),   const2d((1, d_model)),   # Wv, bv
                const2d((d_model, d_q_pad)), const2d((1, d_q_pad)),  # Wo (bf16, padded), bo
            ],
            out_specs=(batch_blk((bb, tq_p, d_q_pad)),    # output (lane-dense)
                       batch_blk((bb, tq_p, tk_p))),      # mean attention (lane-dense)
        ),
        compiler_params=pltpu.CompilerParams(
            dimension_semantics=("parallel",),
            vmem_limit_bytes=48 * 1024 * 1024),
    )(x_p, encx_p, ency_p, bias,
      prep["wq"], prep["bq"], prep["wk"], prep["bk"],
      prep["wv"], prep["bv"], prep["wo"], prep["bo"])

    return out[:, :Tq, :d_q_out], attn[:, :Tq, :Tk]


def _reference(x, enc_x, enc_y, src_mask, params, *, num_heads):
    """Pure-JAX reference for correctness checking."""
    d_model = params["wq"].shape[1]
    d_k = d_model // num_heads
    q = jnp.einsum("btd,de->bte", x, params["wq"]) + params["bq"]
    k = jnp.einsum("bsd,de->bse", enc_x, params["wk"]) + params["bk"]
    v = jnp.einsum("bsd,de->bse", enc_y, params["wv"]) + params["bv"]

    def split(a):
        B, T, _ = a.shape
        return a.reshape(B, T, num_heads, d_k).transpose(0, 2, 1, 3)

    qh, kh, vh = split(q), split(k), split(v)
    s = jnp.einsum("bhqd,bhkd->bhqk", qh, kh) / math.sqrt(d_k)
    bias = jnp.where(src_mask[:, None, None, :] > 0.5, 0.0, -1e9)
    p = jax.nn.softmax(s + bias, axis=-1)
    ctx = jnp.einsum("bhqk,bhkd->bhqd", p, vh)
    B, _, Tq, _ = ctx.shape
    ctx = ctx.transpose(0, 2, 1, 3).reshape(B, Tq, d_model)
    out = jnp.einsum("btd,de->bte", ctx, params["wo"]) + params["bo"]
    return out, p.mean(axis=1)


if __name__ == "__main__":
    # Small decoder-side cross-attention problem.
    B, Tq, Tk = 2, 8, 16
    d_q = 32        # conv_channels (decoder hidden / input_shape[2])
    d_kv = 48       # src_embedding_size
    d_model = 64    # trg_embedding_size
    H = 4           # num_heads

    key = jax.random.PRNGKey(0)
    ks = jax.random.split(key, 12)
    sc = 0.1
    x = jax.random.normal(ks[0], (B, Tq, d_q), jnp.float32)
    enc_x = jax.random.normal(ks[1], (B, Tk, d_kv), jnp.float32)
    enc_y = jax.random.normal(ks[2], (B, Tk, d_kv), jnp.float32)

    src_lengths = jnp.array([Tk, 11], jnp.int32)
    src_mask = (jnp.arange(Tk)[None, :] < src_lengths[:, None]).astype(jnp.float32)  # (B, Tk)

    params = {
        "wq": sc * jax.random.normal(ks[3], (d_q, d_model), jnp.float32),
        "bq": sc * jax.random.normal(ks[4], (1, d_model), jnp.float32),
        "wk": sc * jax.random.normal(ks[5], (d_kv, d_model), jnp.float32),
        "bk": sc * jax.random.normal(ks[6], (1, d_model), jnp.float32),
        "wv": sc * jax.random.normal(ks[7], (d_kv, d_model), jnp.float32),
        "bv": sc * jax.random.normal(ks[8], (1, d_model), jnp.float32),
        "wo": sc * jax.random.normal(ks[9], (d_model, d_q), jnp.float32),
        "bo": sc * jax.random.normal(ks[10], (1, d_q), jnp.float32),
    }

    # One-time parameter prep (hoisted out of the forward path).
    prep, meta = prepare_encoder_attention_params(params, num_heads=H)

    out, attn = encoder_attention_op(x, enc_x, enc_y, src_mask, prep, meta)
    jax.block_until_ready((out, attn))

    ref_out, ref_attn = _reference(x, enc_x, enc_y, src_mask, params, num_heads=H)
    assert out.shape == (B, Tq, d_q) and attn.shape == (B, Tq, Tk)
    # Tolerance sized for the bf16 MXU operands in the score / PV / output-projection matmuls.
    assert jnp.allclose(out, ref_out, atol=5e-3, rtol=5e-3)
    assert jnp.allclose(attn, ref_attn, atol=5e-3, rtol=5e-3)

    print("KERNEL_OK")
</pallas_src>

<mosaic_0001>
module attributes {stable_mosaic.version = 11 : i64} {
  func.func @_mha_kernel(%arg0: i32, %arg1: memref<1x8x32xf32, #tpu.memory_space<vmem>>, %arg2: memref<1x128x48xf32, #tpu.memory_space<vmem>>, %arg3: memref<1x128x48xf32, #tpu.memory_space<vmem>>, %arg4: memref<1x1x128xf32, #tpu.memory_space<vmem>>, %arg5: memref<32x64xf32, #tpu.memory_space<vmem>>, %arg6: memref<1x64xf32, #tpu.memory_space<vmem>>, %arg7: memref<48x64xf32, #tpu.memory_space<vmem>>, %arg8: memref<1x64xf32, #tpu.memory_space<vmem>>, %arg9: memref<48x64xf32, #tpu.memory_space<vmem>>, %arg10: memref<1x64xf32, #tpu.memory_space<vmem>>, %arg11: memref<64x128xbf16, #tpu.memory_space<vmem>>, %arg12: memref<1x128xf32, #tpu.memory_space<vmem>>, %arg13: memref<1x8x128xf32, #tpu.memory_space<vmem>>, %arg14: memref<1x8x128xf32, #tpu.memory_space<vmem>>) attributes {dimension_semantics = [#tpu.dimension_semantics<parallel>], iteration_bounds = array<i64: 2>, scalar_prefetch = 0 : i64, scratch_operands = 0 : i64, tpu.core_type = #tpu.core_type<tc>, window_params = [{transform_indices = @transform_0, window_bounds = array<i64: 1, 8, 32>}, {transform_indices = @transform_1, window_bounds = array<i64: 1, 128, 48>}, {transform_indices = @transform_2, window_bounds = array<i64: 1, 128, 48>}, {transform_indices = @transform_3, window_bounds = array<i64: 1, 1, 128>}, {pipeline_mode = #tpu.pipeline_mode<synchronous>, transform_indices = @transform_4, window_bounds = array<i64: 32, 64>}, {pipeline_mode = #tpu.pipeline_mode<synchronous>, transform_indices = @transform_5, window_bounds = array<i64: 1, 64>}, {pipeline_mode = #tpu.pipeline_mode<synchronous>, transform_indices = @transform_6, window_bounds = array<i64: 48, 64>}, {pipeline_mode = #tpu.pipeline_mode<synchronous>, transform_indices = @transform_7, window_bounds = array<i64: 1, 64>}, {pipeline_mode = #tpu.pipeline_mode<synchronous>, transform_indices = @transform_8, window_bounds = array<i64: 48, 64>}, {pipeline_mode = #tpu.pipeline_mode<synchronous>, transform_indices = @transform_9, window_bounds = array<i64: 1, 64>}, {pipeline_mode = #tpu.pipeline_mode<synchronous>, transform_indices = @transform_10, window_bounds = array<i64: 64, 128>}, {pipeline_mode = #tpu.pipeline_mode<synchronous>, transform_indices = @transform_11, window_bounds = array<i64: 1, 128>}, {transform_indices = @transform_12, window_bounds = array<i64: 1, 8, 128>}, {transform_indices = @transform_13, window_bounds = array<i64: 1, 8, 128>}]} {
    %c0 = arith.constant 0 : index
    %c0_0 = arith.constant 0 : index
    %c0_1 = arith.constant 0 : index
    %0 = vector.load %arg1[%c0, %c0_0, %c0_1] : memref<1x8x32xf32, #tpu.memory_space<vmem>>, vector<1x8x32xf32>
    %1 = vector.shape_cast %0 : vector<1x8x32xf32> to vector<8x32xf32>
    %c0_2 = arith.constant 0 : index
    %c0_3 = arith.constant 0 : index
    %c0_4 = arith.constant 0 : index
    %2 = vector.load %arg2[%c0_2, %c0_3, %c0_4] : memref<1x128x48xf32, #tpu.memory_space<vmem>>, vector<1x128x48xf32>
    %3 = vector.shape_cast %2 : vector<1x128x48xf32> to vector<128x48xf32>
    %c0_5 = arith.constant 0 : index
    %c0_6 = arith.constant 0 : index
    %c0_7 = arith.constant 0 : index
    %4 = vector.load %arg3[%c0_5, %c0_6, %c0_7] : memref<1x128x48xf32, #tpu.memory_space<vmem>>, vector<1x128x48xf32>
    %5 = vector.shape_cast %4 : vector<1x128x48xf32> to vector<128x48xf32>
    %c0_8 = arith.constant 0 : index
    %c0_9 = arith.constant 0 : index
    %6 = vector.load %arg5[%c0_8, %c0_9] : memref<32x64xf32, #tpu.memory_space<vmem>>, vector<32x64xf32>
    %cst = arith.constant dense<0.000000e+00> : vector<8x64xf32>
    %7 = tpu.matmul %1, %6, %cst {dimension_numbers = #tpu.dot_dimension_numbers<[1], [0], [0], [1], [0, 0, 1, 1], [], []>} : vector<8x32xf32>, vector<32x64xf32>, vector<8x64xf32> -> vector<8x64xf32>
    %c0_10 = arith.constant 0 : index
    %c0_11 = arith.constant 0 : index
    %8 = vector.load %arg6[%c0_10, %c0_11] : memref<1x64xf32, #tpu.memory_space<vmem>>, vector<1x64xf32>
    %9 = vector.broadcast %8 : vector<1x64xf32> to vector<8x64xf32>
    %10 = arith.addf %7, %9 : vector<8x64xf32>
    %c0_12 = arith.constant 0 : index
    %c0_13 = arith.constant 0 : index
    %11 = vector.load %arg7[%c0_12, %c0_13] : memref<48x64xf32, #tpu.memory_space<vmem>>, vector<48x64xf32>
    %cst_14 = arith.constant dense<0.000000e+00> : vector<128x64xf32>
    %12 = tpu.matmul %3, %11, %cst_14 {dimension_numbers = #tpu.dot_dimension_numbers<[1], [0], [0], [1], [0, 0, 1, 1], [], []>} : vector<128x48xf32>, vector<48x64xf32>, vector<128x64xf32> -> vector<128x64xf32>
    %c0_15 = arith.constant 0 : index
    %c0_16 = arith.constant 0 : index
    %13 = vector.load %arg8[%c0_15, %c0_16] : memref<1x64xf32, #tpu.memory_space<vmem>>, vector<1x64xf32>
    %14 = vector.broadcast %13 : vector<1x64xf32> to vector<128x64xf32>
    %15 = arith.addf %12, %14 : vector<128x64xf32>
    %c0_17 = arith.constant 0 : index
    %c0_18 = arith.constant 0 : index
    %16 = vector.load %arg9[%c0_17, %c0_18] : memref<48x64xf32, #tpu.memory_space<vmem>>, vector<48x64xf32>
    %cst_19 = arith.constant dense<0.000000e+00> : vector<128x64xf32>
    %17 = tpu.matmul %5, %16, %cst_19 {dimension_numbers = #tpu.dot_dimension_numbers<[1], [0], [0], [1], [0, 0, 1, 1], [], []>} : vector<128x48xf32>, vector<48x64xf32>, vector<128x64xf32> -> vector<128x64xf32>
    %c0_20 = arith.constant 0 : index
    %c0_21 = arith.constant 0 : index
    %18 = vector.load %arg10[%c0_20, %c0_21] : memref<1x64xf32, #tpu.memory_space<vmem>>, vector<1x64xf32>
    %19 = vector.broadcast %18 : vector<1x64xf32> to vector<128x64xf32>
    %20 = arith.addf %17, %19 : vector<128x64xf32>
    %21 = vector.shape_cast %10 : vector<8x64xf32> to vector<1x8x64xf32>
    %22 = arith.truncf %21 : vector<1x8x64xf32> to vector<1x8x64xbf16>
    %23 = vector.shape_cast %15 : vector<128x64xf32> to vector<1x128x64xf32>
    %24 = arith.truncf %23 : vector<1x128x64xf32> to vector<1x128x64xbf16>
    %25 = vector.shape_cast %20 : vector<128x64xf32> to vector<1x128x64xf32>
    %26 = arith.truncf %25 : vector<1x128x64xf32> to vector<1x128x64xbf16>
    %c0_22 = arith.constant 0 : index
    %c0_23 = arith.constant 0 : index
    %c0_24 = arith.constant 0 : index
    %27 = vector.load %arg4[%c0_22, %c0_23, %c0_24] : memref<1x1x128xf32, #tpu.memory_space<vmem>>, vector<1x1x128xf32>
    %cst_25 = arith.constant 0.000000e+00 : f32
    %28 = vector.broadcast %cst_25 : f32 to vector<1x8x128xf32>
    %29 = vector.extract_strided_slice %22 {offsets = [0, 0, 0], sizes = [1, 8, 16], strides = [1, 1, 1]} : vector<1x8x64xbf16> to vector<1x8x16xbf16>
    %30 = vector.extract_strided_slice %24 {offsets = [0, 0, 0], sizes = [1, 128, 16], strides = [1, 1, 1]} : vector<1x128x64xbf16> to vector<1x128x16xbf16>
    %31 = vector.extract_strided_slice %26 {offsets = [0, 0, 0], sizes = [1, 128, 16], strides = [1, 1, 1]} : vector<1x128x64xbf16> to vector<1x128x16xbf16>
    "tpu.trace_start"() <{level = 10 : i32, message = "bqd,bkd->bqk"}> : () -> ()
    %cst_26 = arith.constant dense<0.000000e+00> : vector<1x8x128xf32>
    %32 = tpu.matmul %29, %30, %cst_26 {dimension_numbers = #tpu.dot_dimension_numbers<[2], [2], [1], [1], [0, 0, 0, 1, 1, 1], [0], [0]>} : vector<1x8x16xbf16>, vector<1x128x16xbf16>, vector<1x8x128xf32> -> vector<1x8x128xf32>
    "tpu.trace_stop"() : () -> ()
    %33 = vector.broadcast %27 : vector<1x1x128xf32> to vector<1x8x128xf32>
    %34 = arith.addf %32, %33 : vector<1x8x128xf32>
    %cst_27 = arith.constant dense<0xFF800000> : vector<1x8xf32>
    %35 = vector.multi_reduction <maximumf>, %34, %cst_27 [2] : vector<1x8x128xf32> to vector<1x8xf32>
    %36 = vector.shape_cast %35 : vector<1x8xf32> to vector<1x8x1xf32>
    %37 = vector.broadcast %36 : vector<1x8x1xf32> to vector<1x8x128xf32>
    %38 = arith.subf %34, %37 : vector<1x8x128xf32>
    %39 = math.exp %38 : vector<1x8x128xf32>
    %cst_28 = arith.constant dense<0.000000e+00> : vector<1x8xf32>
    %40 = vector.multi_reduction <add>, %39, %cst_28 [2] : vector<1x8x128xf32> to vector<1x8xf32>
    %41 = vector.shape_cast %40 : vector<1x8xf32> to vector<1x8x1xf32>
    %42 = tpu.reciprocal %41 : vector<1x8x1xf32> -> vector<1x8x1xf32>
    %43 = vector.broadcast %42 : vector<1x8x1xf32> to vector<1x8x128xf32>
    %44 = arith.mulf %39, %43 : vector<1x8x128xf32>
    %45 = arith.addf %28, %44 : vector<1x8x128xf32>
    %46 = arith.truncf %44 : vector<1x8x128xf32> to vector<1x8x128xbf16>
    "tpu.trace_start"() <{level = 10 : i32, message = "bqk,bkd->bqd"}> : () -> ()
    %cst_29 = arith.constant dense<0.000000e+00> : vector<1x8x16xf32>
    %47 = tpu.matmul %46, %31, %cst_29 {dimension_numbers = #tpu.dot_dimension_numbers<[2], [1], [1], [2], [0, 0, 0, 1, 1, 2], [0], [0]>} : vector<1x8x128xbf16>, vector<1x128x16xbf16>, vector<1x8x16xf32> -> vector<1x8x16xf32>
    "tpu.trace_stop"() : () -> ()
    %48 = vector.extract_strided_slice %22 {offsets = [0, 0, 16], sizes = [1, 8, 16], strides = [1, 1, 1]} : vector<1x8x64xbf16> to vector<1x8x16xbf16>
    %49 = vector.extract_strided_slice %24 {offsets = [0, 0, 16], sizes = [1, 128, 16], strides = [1, 1, 1]} : vector<1x128x64xbf16> to vector<1x128x16xbf16>
    %50 = vector.extract_strided_slice %26 {offsets = [0, 0, 16], sizes = [1, 128, 16], strides = [1, 1, 1]} : vector<1x128x64xbf16> to vector<1x128x16xbf16>
    "tpu.trace_start"() <{level = 10 : i32, message = "bqd,bkd->bqk"}> : () -> ()
    %cst_30 = arith.constant dense<0.000000e+00> : vector<1x8x128xf32>
    %51 = tpu.matmul %48, %49, %cst_30 {dimension_numbers = #tpu.dot_dimension_numbers<[2], [2], [1], [1], [0, 0, 0, 1, 1, 1], [0], [0]>} : vector<1x8x16xbf16>, vector<1x128x16xbf16>, vector<1x8x128xf32> -> vector<1x8x128xf32>
    "tpu.trace_stop"() : () -> ()
    %52 = vector.broadcast %27 : vector<1x1x128xf32> to vector<1x8x128xf32>
    %53 = arith.addf %51, %52 : vector<1x8x128xf32>
    %cst_31 = arith.constant dense<0xFF800000> : vector<1x8xf32>
    %54 = vector.multi_reduction <maximumf>, %53, %cst_31 [2] : vector<1x8x128xf32> to vector<1x8xf32>
    %55 = vector.shape_cast %54 : vector<1x8xf32> to vector<1x8x1xf32>
    %56 = vector.broadcast %55 : vector<1x8x1xf32> to vector<1x8x128xf32>
    %57 = arith.subf %53, %56 : vector<1x8x128xf32>
    %58 = math.exp %57 : vector<1x8x128xf32>
    %cst_32 = arith.constant dense<0.000000e+00> : vector<1x8xf32>
    %59 = vector.multi_reduction <add>, %58, %cst_32 [2] : vector<1x8x128xf32> to vector<1x8xf32>
    %60 = vector.shape_cast %59 : vector<1x8xf32> to vector<1x8x1xf32>
    %61 = tpu.reciprocal %60 : vector<1x8x1xf32> -> vector<1x8x1xf32>
    %62 = vector.broadcast %61 : vector<1x8x1xf32> to vector<1x8x128xf32>
    %63 = arith.mulf %58, %62 : vector<1x8x128xf32>
    %64 = arith.addf %45, %63 : vector<1x8x128xf32>
    %65 = arith.truncf %63 : vector<1x8x128xf32> to vector<1x8x128xbf16>
    "tpu.trace_start"() <{level = 10 : i32, message = "bqk,bkd->bqd"}> : () -> ()
    %cst_33 = arith.constant dense<0.000000e+00> : vector<1x8x16xf32>
    %66 = tpu.matmul %65, %50, %cst_33 {dimension_numbers = #tpu.dot_dimension_numbers<[2], [1], [1], [2], [0, 0, 0, 1, 1, 2], [0], [0]>} : vector<1x8x128xbf16>, vector<1x128x16xbf16>, vector<1x8x16xf32> -> vector<1x8x16xf32>
    "tpu.trace_stop"() : () -> ()
    %67 = vector.extract_strided_slice %22 {offsets = [0, 0, 32], sizes = [1, 8, 16], strides = [1, 1, 1]} : vector<1x8x64xbf16> to vector<1x8x16xbf16>
    %68 = vector.extract_strided_slice %24 {offsets = [0, 0, 32], sizes = [1, 128, 16], strides = [1, 1, 1]} : vector<1x128x64xbf16> to vector<1x128x16xbf16>
    %69 = vector.extract_strided_slice %26 {offsets = [0, 0, 32], sizes = [1, 128, 16], strides = [1, 1, 1]} : vector<1x128x64xbf16> to vector<1x128x16xbf16>
    "tpu.trace_start"() <{level = 10 : i32, message = "bqd,bkd->bqk"}> : () -> ()
    %cst_34 = arith.constant dense<0.000000e+00> : vector<1x8x128xf32>
    %70 = tpu.matmul %67, %68, %cst_34 {dimension_numbers = #tpu.dot_dimension_numbers<[2], [2], [1], [1], [0, 0, 0, 1, 1, 1], [0], [0]>} : vector<1x8x16xbf16>, vector<1x128x16xbf16>, vector<1x8x128xf32> -> vector<1x8x128xf32>
    "tpu.trace_stop"() : () -> ()
    %71 = vector.broadcast %27 : vector<1x1x128xf32> to vector<1x8x128xf32>
    %72 = arith.addf %70, %71 : vector<1x8x128xf32>
    %cst_35 = arith.constant dense<0xFF800000> : vector<1x8xf32>
    %73 = vector.multi_reduction <maximumf>, %72, %cst_35 [2] : vector<1x8x128xf32> to vector<1x8xf32>
    %74 = vector.shape_cast %73 : vector<1x8xf32> to vector<1x8x1xf32>
    %75 = vector.broadcast %74 : vector<1x8x1xf32> to vector<1x8x128xf32>
    %76 = arith.subf %72, %75 : vector<1x8x128xf32>
    %77 = math.exp %76 : vector<1x8x128xf32>
    %cst_36 = arith.constant dense<0.000000e+00> : vector<1x8xf32>
    %78 = vector.multi_reduction <add>, %77, %cst_36 [2] : vector<1x8x128xf32> to vector<1x8xf32>
    %79 = vector.shape_cast %78 : vector<1x8xf32> to vector<1x8x1xf32>
    %80 = tpu.reciprocal %79 : vector<1x8x1xf32> -> vector<1x8x1xf32>
    %81 = vector.broadcast %80 : vector<1x8x1xf32> to vector<1x8x128xf32>
    %82 = arith.mulf %77, %81 : vector<1x8x128xf32>
    %83 = arith.addf %64, %82 : vector<1x8x128xf32>
    %84 = arith.truncf %82 : vector<1x8x128xf32> to vector<1x8x128xbf16>
    "tpu.trace_start"() <{level = 10 : i32, message = "bqk,bkd->bqd"}> : () -> ()
    %cst_37 = arith.constant dense<0.000000e+00> : vector<1x8x16xf32>
    %85 = tpu.matmul %84, %69, %cst_37 {dimension_numbers = #tpu.dot_dimension_numbers<[2], [1], [1], [2], [0, 0, 0, 1, 1, 2], [0], [0]>} : vector<1x8x128xbf16>, vector<1x128x16xbf16>, vector<1x8x16xf32> -> vector<1x8x16xf32>
    "tpu.trace_stop"() : () -> ()
    %86 = vector.extract_strided_slice %22 {offsets = [0, 0, 48], sizes = [1, 8, 16], strides = [1, 1, 1]} : vector<1x8x64xbf16> to vector<1x8x16xbf16>
    %87 = vector.extract_strided_slice %24 {offsets = [0, 0, 48], sizes = [1, 128, 16], strides = [1, 1, 1]} : vector<1x128x64xbf16> to vector<1x128x16xbf16>
    %88 = vector.extract_strided_slice %26 {offsets = [0, 0, 48], sizes = [1, 128, 16], strides = [1, 1, 1]} : vector<1x128x64xbf16> to vector<1x128x16xbf16>
    "tpu.trace_start"() <{level = 10 : i32, message = "bqd,bkd->bqk"}> : () -> ()
    %cst_38 = arith.constant dense<0.000000e+00> : vector<1x8x128xf32>
    %89 = tpu.matmul %86, %87, %cst_38 {dimension_numbers = #tpu.dot_dimension_numbers<[2], [2], [1], [1], [0, 0, 0, 1, 1, 1], [0], [0]>} : vector<1x8x16xbf16>, vector<1x128x16xbf16>, vector<1x8x128xf32> -> vector<1x8x128xf32>
    "tpu.trace_stop"() : () -> ()
    %90 = vector.broadcast %27 : vector<1x1x128xf32> to vector<1x8x128xf32>
    %91 = arith.addf %89, %90 : vector<1x8x128xf32>
    %cst_39 = arith.constant dense<0xFF800000> : vector<1x8xf32>
    %92 = vector.multi_reduction <maximumf>, %91, %cst_39 [2] : vector<1x8x128xf32> to vector<1x8xf32>
    %93 = vector.shape_cast %92 : vector<1x8xf32> to vector<1x8x1xf32>
    %94 = vector.broadcast %93 : vector<1x8x1xf32> to vector<1x8x128xf32>
    %95 = arith.subf %91, %94 : vector<1x8x128xf32>
    %96 = math.exp %95 : vector<1x8x128xf32>
    %cst_40 = arith.constant dense<0.000000e+00> : vector<1x8xf32>
    %97 = vector.multi_reduction <add>, %96, %cst_40 [2] : vector<1x8x128xf32> to vector<1x8xf32>
    %98 = vector.shape_cast %97 : vector<1x8xf32> to vector<1x8x1xf32>
    %99 = tpu.reciprocal %98 : vector<1x8x1xf32> -> vector<1x8x1xf32>
    %100 = vector.broadcast %99 : vector<1x8x1xf32> to vector<1x8x128xf32>
    %101 = arith.mulf %96, %100 : vector<1x8x128xf32>
    %102 = arith.addf %83, %101 : vector<1x8x128xf32>
    %103 = arith.truncf %101 : vector<1x8x128xf32> to vector<1x8x128xbf16>
    "tpu.trace_start"() <{level = 10 : i32, message = "bqk,bkd->bqd"}> : () -> ()
    %cst_41 = arith.constant dense<0.000000e+00> : vector<1x8x16xf32>
    %104 = tpu.matmul %103, %88, %cst_41 {dimension_numbers = #tpu.dot_dimension_numbers<[2], [1], [1], [2], [0, 0, 0, 1, 1, 2], [0], [0]>} : vector<1x8x128xbf16>, vector<1x128x16xbf16>, vector<1x8x16xf32> -> vector<1x8x16xf32>
    "tpu.trace_stop"() : () -> ()
    %cst_42 = arith.constant 2.500000e-01 : f32
    %105 = vector.broadcast %cst_42 : f32 to vector<1x8x128xf32>
    %106 = arith.mulf %102, %105 : vector<1x8x128xf32>
    %c0_43 = arith.constant 0 : index
    %c0_44 = arith.constant 0 : index
    %c0_45 = arith.constant 0 : index
    %107 = vector.load %arg14[%c0_43, %c0_44, %c0_45] : memref<1x8x128xf32, #tpu.memory_space<vmem>>, vector<1x8x128xf32>
    tpu.vector_store %arg14[%c0_43, %c0_44, %c0_45], %106 {strides = array<i32>} : memref<1x8x128xf32, #tpu.memory_space<vmem>>, vector<1x8x128xf32>,
    %108 = tpu.concatenate %47, %66, %85, %104 in 2 : vector<1x8x16xf32>, vector<1x8x16xf32>, vector<1x8x16xf32>, vector<1x8x16xf32> -> vector<1x8x64xf32>
    %109 = vector.shape_cast %108 : vector<1x8x64xf32> to vector<8x64xf32>
    %110 = arith.truncf %109 : vector<8x64xf32> to vector<8x64xbf16>
    %c0_46 = arith.constant 0 : index
    %c0_47 = arith.constant 0 : index
    %111 = vector.load %arg11[%c0_46, %c0_47] : memref<64x128xbf16, #tpu.memory_space<vmem>>, vector<64x128xbf16>
    %cst_48 = arith.constant dense<0.000000e+00> : vector<8x128xf32>
    %112 = tpu.matmul %110, %111, %cst_48 {dimension_numbers = #tpu.dot_dimension_numbers<[1], [0], [0], [1], [0, 0, 1, 1], [], []>} : vector<8x64xbf16>, vector<64x128xbf16>, vector<8x128xf32> -> vector<8x128xf32>
    %c0_49 = arith.constant 0 : index
    %c0_50 = arith.constant 0 : index
    %113 = vector.load %arg12[%c0_49, %c0_50] : memref<1x128xf32, #tpu.memory_space<vmem>>, vector<1x128xf32>
    %114 = vector.broadcast %113 : vector<1x128xf32> to vector<8x128xf32>
    %115 = arith.addf %112, %114 : vector<8x128xf32>
    %116 = vector.shape_cast %115 : vector<8x128xf32> to vector<1x8x128xf32>
    %c0_51 = arith.constant 0 : index
    %c0_52 = arith.constant 0 : index
    %c0_53 = arith.constant 0 : index
    %117 = vector.load %arg13[%c0_51, %c0_52, %c0_53] : memref<1x8x128xf32, #tpu.memory_space<vmem>>, vector<1x8x128xf32>
    tpu.vector_store %arg13[%c0_51, %c0_52, %c0_53], %116 {strides = array<i32>} : memref<1x8x128xf32, #tpu.memory_space<vmem>>, vector<1x8x128xf32>,
    return
  }
  func.func @transform_0(%arg0: i32) -> (i32, i32, i32) {
    %c0_i32 = arith.constant 0 : i32
    %c0_i32_0 = arith.constant 0 : i32
    %c0_i32_1 = arith.constant 0 : i32
    return %arg0, %c0_i32, %c0_i32_0 : i32, i32, i32
  }
  func.func @transform_1(%arg0: i32) -> (i32, i32, i32) {
    %c0_i32 = arith.constant 0 : i32
    %c0_i32_0 = arith.constant 0 : i32
    %c0_i32_1 = arith.constant 0 : i32
    return %arg0, %c0_i32, %c0_i32_0 : i32, i32, i32
  }
  func.func @transform_2(%arg0: i32) -> (i32, i32, i32) {
    %c0_i32 = arith.constant 0 : i32
    %c0_i32_0 = arith.constant 0 : i32
    %c0_i32_1 = arith.constant 0 : i32
    return %arg0, %c0_i32, %c0_i32_0 : i32, i32, i32
  }
  func.func @transform_3(%arg0: i32) -> (i32, i32, i32) {
    %c0_i32 = arith.constant 0 : i32
    %c0_i32_0 = arith.constant 0 : i32
    %c0_i32_1 = arith.constant 0 : i32
    return %arg0, %c0_i32, %c0_i32_0 : i32, i32, i32
  }
  func.func @transform_4(%arg0: i32) -> (i32, i32) {
    %c0_i32 = arith.constant 0 : i32
    %c0_i32_0 = arith.constant 0 : i32
    %c0_i32_1 = arith.constant 0 : i32
    return %c0_i32, %c0_i32_0 : i32, i32
  }
  func.func @transform_5(%arg0: i32) -> (i32, i32) {
    %c0_i32 = arith.constant 0 : i32
    %c0_i32_0 = arith.constant 0 : i32
    %c0_i32_1 = arith.constant 0 : i32
    return %c0_i32, %c0_i32_0 : i32, i32
  }
  func.func @transform_6(%arg0: i32) -> (i32, i32) {
    %c0_i32 = arith.constant 0 : i32
    %c0_i32_0 = arith.constant 0 : i32
    %c0_i32_1 = arith.constant 0 : i32
    return %c0_i32, %c0_i32_0 : i32, i32
  }
  func.func @transform_7(%arg0: i32) -> (i32, i32) {
    %c0_i32 = arith.constant 0 : i32
    %c0_i32_0 = arith.constant 0 : i32
    %c0_i32_1 = arith.constant 0 : i32
    return %c0_i32, %c0_i32_0 : i32, i32
  }
  func.func @transform_8(%arg0: i32) -> (i32, i32) {
    %c0_i32 = arith.constant 0 : i32
    %c0_i32_0 = arith.constant 0 : i32
    %c0_i32_1 = arith.constant 0 : i32
    return %c0_i32, %c0_i32_0 : i32, i32
  }
  func.func @transform_9(%arg0: i32) -> (i32, i32) {
    %c0_i32 = arith.constant 0 : i32
    %c0_i32_0 = arith.constant 0 : i32
    %c0_i32_1 = arith.constant 0 : i32
    return %c0_i32, %c0_i32_0 : i32, i32
  }
  func.func @transform_10(%arg0: i32) -> (i32, i32) {
    %c0_i32 = arith.constant 0 : i32
    %c0_i32_0 = arith.constant 0 : i32
    %c0_i32_1 = arith.constant 0 : i32
    return %c0_i32, %c0_i32_0 : i32, i32
  }
  func.func @transform_11(%arg0: i32) -> (i32, i32) {
    %c0_i32 = arith.constant 0 : i32
    %c0_i32_0 = arith.constant 0 : i32
    %c0_i32_1 = arith.constant 0 : i32
    return %c0_i32, %c0_i32_0 : i32, i32
  }
  func.func @transform_12(%arg0: i32) -> (i32, i32, i32) {
    %c0_i32 = arith.constant 0 : i32
    %c0_i32_0 = arith.constant 0 : i32
    %c0_i32_1 = arith.constant 0 : i32
    return %arg0, %c0_i32, %c0_i32_0 : i32, i32, i32
  }
  func.func @transform_13(%arg0: i32) -> (i32, i32, i32) {
    %c0_i32 = arith.constant 0 : i32
    %c0_i32_0 = arith.constant 0 : i32
    %c0_i32_1 = arith.constant 0 : i32
    return %arg0, %c0_i32, %c0_i32_0 : i32, i32, i32
  }
}

</mosaic_0001>

<llo_original>
// kernel: tpu_custom_call.1
$region0: #{tpu_custom_call.1}
  #allocation0 [shape = 'u32[]', space=smem, size = 0x4, offset = 0x4, fixed_abs, tag = 'smem constant byte address 0x4 - core index']
  #allocation1 [shape = 'u32[144,128]{1,0:T(1,128)}', space=vmem, size = 0x12000, scoped, tag = 'internal scratch']
  %s0 = inlined_call_operand.vmem [shape: f32[2,8,32], index: 0, kind: input, shape index: {}]
  %s1 = inlined_call_operand.vmem [shape: f32[2,128,48], index: 1, kind: input, shape index: {}]
  %s2 = inlined_call_operand.vmem [shape: f32[2,128,48], index: 2, kind: input, shape index: {}]
  %s3 = inlined_call_operand.vmem [shape: f32[2,1,128], index: 3, kind: input, shape index: {}]
  %s4 = inlined_call_operand.vmem [shape: f32[32,64], index: 4, kind: input, shape index: {}]
  %s5 = inlined_call_operand.vmem [shape: f32[1,64], index: 5, kind: input, shape index: {}]
  %s6 = inlined_call_operand.vmem [shape: f32[48,64], index: 6, kind: input, shape index: {}]
  %s7 = inlined_call_operand.vmem [shape: f32[1,64], index: 7, kind: input, shape index: {}]
  %s8 = inlined_call_operand.vmem [shape: f32[48,64], index: 8, kind: input, shape index: {}]
  %s9 = inlined_call_operand.vmem [shape: f32[1,64], index: 9, kind: input, shape index: {}]
  %s10 = inlined_call_operand.vmem [shape: bf16[64,128], index: 10, kind: input, shape index: {}]
  %s11 = inlined_call_operand.vmem [shape: f32[1,128], index: 11, kind: input, shape index: {}]
  %s12 = inlined_call_operand.hbm [shape: f32[2,8,128], index: 12, kind: output, shape index: {0}]
  %s13 = inlined_call_operand.hbm [shape: f32[2,8,128], index: 13, kind: output, shape index: {1}]
  %14 = xla_tuple %s12, %s13
  %s15 = sld [smem:[#allocation0]]
  $region89: #{tpu_custom_call.1} parent=0
    _
  %s17 = ssub.s32 1, %s15
  %s18 = scalar_select 0, %s17, %s15
  $region1: #{tpu_custom_call.1} parent=0
    #allocation2 [shape = 'u8[8192]{0}', space=vmem, size = 0x2000, scoped, tag = 'output window, operand 0']
    #allocation3 [shape = 's32[2]{0}', space=sflag, size = 0x8, scoped, tag = 'scoped memory for tpu_custom_call.1']
    #allocation4 [shape = 'u8[8192]{0}', space=vmem, size = 0x2000, scoped, tag = 'output window, operand 1']
    #allocation5 [shape = 's32[2]{0}', space=sflag, size = 0x8, scoped, tag = 'scoped memory for tpu_custom_call.1']
    %19 = vsyncpa [#allocation3], 0
    %s20 = scalar_lea.sflag [#allocation3], 1
    %21 = vsyncpa %s20, 0
    %22 = vsyncpa [#allocation5], 0
    %s23 = scalar_lea.sflag [#allocation5], 1
    %24 = vsyncpa %s23, 0
    loop: start=0, step=1, limit=4
    $region2: #{tpu_custom_call.1} parent=1 // loop_pre_header
      _
    $region3: #{tpu_custom_call.1} parent=1 // loop_header
      %s26 = sphi 0, %s30
      %p27 = scmp.ge.s32.totalorder %s26, 4
      %s36 = sphi 0, %s38
      %s39 = sphi 0, %s36
      %s40 = sphi 0, %s39
      %s56 = sphi 0, %s40
      %s62 = sphi 0, %s64
      %s65 = sphi 0, %s62
      %s66 = sphi 0, %s65
      %s82 = sphi 0, %s66
      %s88 = sphi 0, %s90
      %s91 = sphi 0, %s88
      %s92 = sphi 0, %s91
      %s108 = sphi 0, %s92
      %s114 = sphi 0, %s116
      %s117 = sphi 0, %s114
      %s118 = sphi 0, %s117
      %s134 = sphi 0, %s118
      %s138 = sphi 0, %s138
      %s140 = sphi 0, %s138
      %s141 = sphi 0, %s140
      %s155 = sphi 0, %s141
      %s159 = sphi 0, %s159
      %s161 = sphi 0, %s159
      %s162 = sphi 0, %s161
      %s176 = sphi 0, %s162
      %s180 = sphi 0, %s180
      %s182 = sphi 0, %s180
      %s183 = sphi 0, %s182
      %s197 = sphi 0, %s183
      %s201 = sphi 0, %s201
      %s203 = sphi 0, %s201
      %s204 = sphi 0, %s203
      %s218 = sphi 0, %s204
      %s222 = sphi 0, %s222
      %s224 = sphi 0, %s222
      %s225 = sphi 0, %s224
      %s239 = sphi 0, %s225
      %s243 = sphi 0, %s243
      %s245 = sphi 0, %s243
      %s246 = sphi 0, %s245
      %s260 = sphi 0, %s246
      %s264 = sphi 0, %s264
      %s266 = sphi 0, %s264
      %s267 = sphi 0, %s266
      %s281 = sphi 0, %s267
      %s285 = sphi 0, %s285
      %s287 = sphi 0, %s285
      %s288 = sphi 0, %s287
      %s302 = sphi 0, %s288
      %s308 = sphi 0, %s310
      %s311 = sphi 0, %s308
      %s312 = sphi 0, %s311
      %s328 = sphi 0, %s312
      %s334 = sphi 0, %s336
      %s337 = sphi 0, %s334
      %s338 = sphi 0, %s337
      %s354 = sphi 0, %s338
    $region4: #{tpu_custom_call.1} parent=1 // loop_header_branch
      %29 = sbr.rel (%p27) target = $region8
    $region5: #{tpu_custom_call.1} parent=1 // loop_body
      %s31 = ssub.s32 %s26, 1
      %s32 = ssub.s32 %s26, 2
      %s33 = sadd.s32 %s26, 1
      %s34 = ssub.s32 %s26, %s33
      %p35 = scmp.eq.s32.totalorder %s34, 0
      %s37 = sadd.s32 %s36, 1
      %s38 = scalar_select %p35, %s36, %s37
      %p41 = pneg %p35
      %p42 = scmp.eq.s32.totalorder %s26, 1
      %p43 = por %p41, %p42
      %p44 = scmp.ne.s32.totalorder %s36, %s39
      %p45 = scmp.eq.s32.totalorder %s26, 0
      %p46 = por %p44, %p45
      %p47 = scmp.ne.s32.totalorder %s36, %s39
      %p48 = scmp.eq.s32.totalorder %s31, 1
      %p49 = por %p47, %p48
      %p50 = scmp.ne.s32.totalorder %s39, %s40
      %p51 = scmp.eq.s32.totalorder %s31, 0
      %p52 = por %p50, %p51
      %p53 = scmp.ne.s32.totalorder %s39, %s40
      %p54 = scmp.eq.s32.totalorder %s32, 1
      %p55 = por %p53, %p54
      %p57 = scmp.ne.s32.totalorder %s40, %s56
      %p58 = scmp.eq.s32.totalorder %s32, 0
      %p59 = por %p57, %p58
      %s60 = ssub.s32 %s26, %s33
      %p61 = scmp.eq.s32.totalorder %s60, 0
      %s63 = sadd.s32 %s62, 1
      %s64 = scalar_select %p61, %s62, %s63
      %p67 = pneg %p61
      %p68 = scmp.eq.s32.totalorder %s26, 1
      %p69 = por %p67, %p68
      %p70 = scmp.ne.s32.totalorder %s62, %s65
      %p71 = scmp.eq.s32.totalorder %s26, 0
      %p72 = por %p70, %p71
      %p73 = scmp.ne.s32.totalorder %s62, %s65
      %p74 = scmp.eq.s32.totalorder %s31, 1
      %p75 = por %p73, %p74
      %p76 = scmp.ne.s32.totalorder %s65, %s66
      %p77 = scmp.eq.s32.totalorder %s31, 0
      %p78 = por %p76, %p77
      %p79 = scmp.ne.s32.totalorder %s65, %s66
      %p80 = scmp.eq.s32.totalorder %s32, 1
      %p81 = por %p79, %p80
      %p83 = scmp.ne.s32.totalorder %s66, %s82
      %p84 = scmp.eq.s32.totalorder %s32, 0
      %p85 = por %p83, %p84
      %s86 = ssub.s32 %s26, %s33
      %p87 = scmp.eq.s32.totalorder %s86, 0
      %s89 = sadd.s32 %s88, 1
      %s90 = scalar_select %p87, %s88, %s89
      %p93 = pneg %p87
      %p94 = scmp.eq.s32.totalorder %s26, 1
      %p95 = por %p93, %p94
      %p96 = scmp.ne.s32.totalorder %s88, %s91
      %p97 = scmp.eq.s32.totalorder %s26, 0
      %p98 = por %p96, %p97
      %p99 = scmp.ne.s32.totalorder %s88, %s91
      %p100 = scmp.eq.s32.totalorder %s31, 1
      %p101 = por %p99, %p100
      %p102 = scmp.ne.s32.totalorder %s91, %s92
      %p103 = scmp.eq.s32.totalorder %s31, 0
      %p104 = por %p102, %p103
      %p105 = scmp.ne.s32.totalorder %s91, %s92
      %p106 = scmp.eq.s32.totalorder %s32, 1
      %p107 = por %p105, %p106
      %p109 = scmp.ne.s32.totalorder %s92, %s108
      %p110 = scmp.eq.s32.totalorder %s32, 0
      %p111 = por %p109, %p110
      %s112 = ssub.s32 %s26, %s33
      %p113 = scmp.eq.s32.totalorder %s112, 0
      %s115 = sadd.s32 %s114, 1
      %s116 = scalar_select %p113, %s114, %s115
      %p119 = pneg %p113
      %p120 = scmp.eq.s32.totalorder %s26, 1
      %p121 = por %p119, %p120
      %p122 = scmp.ne.s32.totalorder %s114, %s117
      %p123 = scmp.eq.s32.totalorder %s26, 0
      %p124 = por %p122, %p123
      %p125 = scmp.ne.s32.totalorder %s114, %s117
      %p126 = scmp.eq.s32.totalorder %s31, 1
      %p127 = por %p125, %p126
      %p128 = scmp.ne.s32.totalorder %s117, %s118
      %p129 = scmp.eq.s32.totalorder %s31, 0
      %p130 = por %p128, %p129
      %p131 = scmp.ne.s32.totalorder %s117, %s118
      %p132 = scmp.eq.s32.totalorder %s32, 1
      %p133 = por %p131, %p132
      %p135 = scmp.ne.s32.totalorder %s118, %s134
      %p136 = scmp.eq.s32.totalorder %s32, 0
      %p137 = por %p135, %p136
      %s139 = sadd.s32 %s138, 1
      %p142 = scmp.eq.s32.totalorder %s26, 1
      %p143 = scmp.ne.s32.totalorder %s138, %s140
      %p144 = scmp.eq.s32.totalorder %s26, 0
      %p145 = por %p143, %p144
      %p146 = scmp.ne.s32.totalorder %s138, %s140
      %p147 = scmp.eq.s32.totalorder %s31, 1
      %p148 = por %p146, %p147
      %p149 = scmp.ne.s32.totalorder %s140, %s141
      %p150 = scmp.eq.s32.totalorder %s31, 0
      %p151 = por %p149, %p150
      %p152 = scmp.ne.s32.totalorder %s140, %s141
      %p153 = scmp.eq.s32.totalorder %s32, 1
      %p154 = por %p152, %p153
      %p156 = scmp.ne.s32.totalorder %s141, %s155
      %p157 = scmp.eq.s32.totalorder %s32, 0
      %p158 = por %p156, %p157
      %s160 = sadd.s32 %s159, 1
      %p163 = scmp.eq.s32.totalorder %s26, 1
      %p164 = scmp.ne.s32.totalorder %s159, %s161
      %p165 = scmp.eq.s32.totalorder %s26, 0
      %p166 = por %p164, %p165
      %p167 = scmp.ne.s32.totalorder %s159, %s161
      %p168 = scmp.eq.s32.totalorder %s31, 1
      %p169 = por %p167, %p168
      %p170 = scmp.ne.s32.totalorder %s161, %s162
      %p171 = scmp.eq.s32.totalorder %s31, 0
      %p172 = por %p170, %p171
      %p173 = scmp.ne.s32.totalorder %s161, %s162
      %p174 = scmp.eq.s32.totalorder %s32, 1
      %p175 = por %p173, %p174
      %p177 = scmp.ne.s32.totalorder %s162, %s176
      %p178 = scmp.eq.s32.totalorder %s32, 0
      %p179 = por %p177, %p178
      %s181 = sadd.s32 %s180, 1
      %p184 = scmp.eq.s32.totalorder %s26, 1
      %p185 = scmp.ne.s32.totalorder %s180, %s182
      %p186 = scmp.eq.s32.totalorder %s26, 0
      %p187 = por %p185, %p186
      %p188 = scmp.ne.s32.totalorder %s180, %s182
      %p189 = scmp.eq.s32.totalorder %s31, 1
      %p190 = por %p188, %p189
      %p191 = scmp.ne.s32.totalorder %s182, %s183
      %p192 = scmp.eq.s32.totalorder %s31, 0
      %p193 = por %p191, %p192
      %p194 = scmp.ne.s32.totalorder %s182, %s183
      %p195 = scmp.eq.s32.totalorder %s32, 1
      %p196 = por %p194, %p195
      %p198 = scmp.ne.s32.totalorder %s183, %s197
      %p199 = scmp.eq.s32.totalorder %s32, 0
      %p200 = por %p198, %p199
      %s202 = sadd.s32 %s201, 1
      %p205 = scmp.eq.s32.totalorder %s26, 1
      %p206 = scmp.ne.s32.totalorder %s201, %s203
      %p207 = scmp.eq.s32.totalorder %s26, 0
      %p208 = por %p206, %p207
      %p209 = scmp.ne.s32.totalorder %s201, %s203
      %p210 = scmp.eq.s32.totalorder %s31, 1
      %p211 = por %p209, %p210
      %p212 = scmp.ne.s32.totalorder %s203, %s204
      %p213 = scmp.eq.s32.totalorder %s31, 0
      %p214 = por %p212, %p213
      %p215 = scmp.ne.s32.totalorder %s203, %s204
      %p216 = scmp.eq.s32.totalorder %s32, 1
      %p217 = por %p215, %p216
      %p219 = scmp.ne.s32.totalorder %s204, %s218
      %p220 = scmp.eq.s32.totalorder %s32, 0
      %p221 = por %p219, %p220
      %s223 = sadd.s32 %s222, 1
      %p226 = scmp.eq.s32.totalorder %s26, 1
      %p227 = scmp.ne.s32.totalorder %s222, %s224
      %p228 = scmp.eq.s32.totalorder %s26, 0
      %p229 = por %p227, %p228
      %p230 = scmp.ne.s32.totalorder %s222, %s224
      %p231 = scmp.eq.s32.totalorder %s31, 1
      %p232 = por %p230, %p231
      %p233 = scmp.ne.s32.totalorder %s224, %s225
      %p234 = scmp.eq.s32.totalorder %s31, 0
      %p235 = por %p233, %p234
      %p236 = scmp.ne.s32.totalorder %s224, %s225
      %p237 = scmp.eq.s32.totalorder %s32, 1
      %p238 = por %p236, %p237
      %p240 = scmp.ne.s32.totalorder %s225, %s239
      %p241 = scmp.eq.s32.totalorder %s32, 0
      %p242 = por %p240, %p241
      %s244 = sadd.s32 %s243, 1
      %p247 = scmp.eq.s32.totalorder %s26, 1
      %p248 = scmp.ne.s32.totalorder %s243, %s245
      %p249 = scmp.eq.s32.totalorder %s26, 0
      %p250 = por %p248, %p249
      %p251 = scmp.ne.s32.totalorder %s243, %s245
      %p252 = scmp.eq.s32.totalorder %s31, 1
      %p253 = por %p251, %p252
      %p254 = scmp.ne.s32.totalorder %s245, %s246
      %p255 = scmp.eq.s32.totalorder %s31, 0
      %p256 = por %p254, %p255
      %p257 = scmp.ne.s32.totalorder %s245, %s246
      %p258 = scmp.eq.s32.totalorder %s32, 1
      %p259 = por %p257, %p258
      %p261 = scmp.ne.s32.totalorder %s246, %s260
      %p262 = scmp.eq.s32.totalorder %s32, 0
      %p263 = por %p261, %p262
      %s265 = sadd.s32 %s264, 1
      %p268 = scmp.eq.s32.totalorder %s26, 1
      %p269 = scmp.ne.s32.totalorder %s264, %s266
      %p270 = scmp.eq.s32.totalorder %s26, 0
      %p271 = por %p269, %p270
      %p272 = scmp.ne.s32.totalorder %s264, %s266
      %p273 = scmp.eq.s32.totalorder %s31, 1
      %p274 = por %p272, %p273
      %p275 = scmp.ne.s32.totalorder %s266, %s267
      %p276 = scmp.eq.s32.totalorder %s31, 0
      %p277 = por %p275, %p276
      %p278 = scmp.ne.s32.totalorder %s266, %s267
      %p279 = scmp.eq.s32.totalorder %s32, 1
      %p280 = por %p278, %p279
      %p282 = scmp.ne.s32.totalorder %s267, %s281
      %p283 = scmp.eq.s32.totalorder %s32, 0
      %p284 = por %p282, %p283
      %s286 = sadd.s32 %s285, 1
      %p289 = scmp.eq.s32.totalorder %s26, 1
      %p290 = scmp.ne.s32.totalorder %s285, %s287
      %p291 = scmp.eq.s32.totalorder %s26, 0
      %p292 = por %p290, %p291
      %p293 = scmp.ne.s32.totalorder %s285, %s287
      %p294 = scmp.eq.s32.totalorder %s31, 1
      %p295 = por %p293, %p294
      %p296 = scmp.ne.s32.totalorder %s287, %s288
      %p297 = scmp.eq.s32.totalorder %s31, 0
      %p298 = por %p296, %p297
      %p299 = scmp.ne.s32.totalorder %s287, %s288
      %p300 = scmp.eq.s32.totalorder %s32, 1
      %p301 = por %p299, %p300
      %p303 = scmp.ne.s32.totalorder %s288, %s302
      %p304 = scmp.eq.s32.totalorder %s32, 0
      %p305 = por %p303, %p304
      %s306 = ssub.s32 %s26, %s33
      %p307 = scmp.eq.s32.totalorder %s306, 0
      %s309 = sadd.s32 %s308, 1
      %s310 = scalar_select %p307, %s308, %s309
      %p313 = pneg %p307
      %p314 = scmp.eq.s32.totalorder %s26, 1
      %p315 = por %p313, %p314
      %p316 = scmp.ne.s32.totalorder %s308, %s311
      %p317 = scmp.eq.s32.totalorder %s26, 0
      %p318 = por %p316, %p317
      %p319 = scmp.ne.s32.totalorder %s308, %s311
      %p320 = scmp.eq.s32.totalorder %s31, 1
      %p321 = por %p319, %p320
      %p322 = scmp.ne.s32.totalorder %s311, %s312
      %p323 = scmp.eq.s32.totalorder %s31, 0
      %p324 = por %p322, %p323
      %p325 = scmp.ne.s32.totalorder %s311, %s312
      %p326 = scmp.eq.s32.totalorder %s32, 1
      %p327 = por %p325, %p326
      %p329 = scmp.ne.s32.totalorder %s312, %s328
      %p330 = scmp.eq.s32.totalorder %s32, 0
      %p331 = por %p329, %p330
      %s332 = ssub.s32 %s26, %s33
      %p333 = scmp.eq.s32.totalorder %s332, 0
      %s335 = sadd.s32 %s334, 1
      %s336 = scalar_select %p333, %s334, %s335
      %p339 = pneg %p333
      %p340 = scmp.eq.s32.totalorder %s26, 1
      %p341 = por %p339, %p340
      %p342 = scmp.ne.s32.totalorder %s334, %s337
      %p343 = scmp.eq.s32.totalorder %s26, 0
      %p344 = por %p342, %p343
      %p345 = scmp.ne.s32.totalorder %s334, %s337
      %p346 = scmp.eq.s32.totalorder %s31, 1
      %p347 = por %p345, %p346
      %p348 = scmp.ne.s32.totalorder %s337, %s338
      %p349 = scmp.eq.s32.totalorder %s31, 0
      %p350 = por %p348, %p349
      %p351 = scmp.ne.s32.totalorder %s337, %s338
      %p352 = scmp.eq.s32.totalorder %s32, 1
      %p353 = por %p351, %p352
      %p355 = scmp.ne.s32.totalorder %s338, %s354
      %p356 = scmp.eq.s32.totalorder %s32, 0
      %p357 = por %p355, %p356
      %p358 = scmp.le.s32.totalorder 1, %s26
      %p359 = scmp.lt.s32.totalorder %s26, 3
      %p360 = pnand %p358, %p359
      %p361 = pneg %p360
      // Predicated region
      $region9: #{tpu_custom_call.1} parent=5 // pred_check
        _
      $region10: #{tpu_custom_call.1} parent=5 // pred_check_branch
        %363 = sbr.rel (%p360) target = $region12
      $region11: #{tpu_custom_call.1} parent=5 // pred_region
        %s364 = ssub.s32 %s26, 1
        // Predicated region
        $region13: #{tpu_custom_call.1} parent=11 // pred_check
          %p365 = pneg %p151
        $region14: #{tpu_custom_call.1} parent=11 // pred_check_branch
          %367 = sbr.rel (%p365) target = $region16
        $region15: #{tpu_custom_call.1} parent=11 // pred_region
          _
        $region16: #{tpu_custom_call.1} parent=11 // pred_fallthru
          _
        // Predicated region
        $region17: #{tpu_custom_call.1} parent=11 // pred_check
          %p368 = pneg %p172
        $region18: #{tpu_custom_call.1} parent=11 // pred_check_branch
          %370 = sbr.rel (%p368) target = $region20
        $region19: #{tpu_custom_call.1} parent=11 // pred_region
          _
        $region20: #{tpu_custom_call.1} parent=11 // pred_fallthru
          _
        // Predicated region
        $region21: #{tpu_custom_call.1} parent=11 // pred_check
          %p371 = pneg %p193
        $region22: #{tpu_custom_call.1} parent=11 // pred_check_branch
          %373 = sbr.rel (%p371) target = $region24
        $region23: #{tpu_custom_call.1} parent=11 // pred_region
          _
        $region24: #{tpu_custom_call.1} parent=11 // pred_fallthru
          _
        // Predicated region
        $region25: #{tpu_custom_call.1} parent=11 // pred_check
          %p374 = pneg %p214
        $region26: #{tpu_custom_call.1} parent=11 // pred_check_branch
          %376 = sbr.rel (%p374) target = $region28
        $region27: #{tpu_custom_call.1} parent=11 // pred_region
          _
        $region28: #{tpu_custom_call.1} parent=11 // pred_fallthru
          _
        // Predicated region
        $region29: #{tpu_custom_call.1} parent=11 // pred_check
          %p377 = pneg %p235
        $region30: #{tpu_custom_call.1} parent=11 // pred_check_branch
          %379 = sbr.rel (%p377) target = $region32
        $region31: #{tpu_custom_call.1} parent=11 // pred_region
          _
        $region32: #{tpu_custom_call.1} parent=11 // pred_fallthru
          _
        // Predicated region
        $region33: #{tpu_custom_call.1} parent=11 // pred_check
          %p380 = pneg %p256
        $region34: #{tpu_custom_call.1} parent=11 // pred_check_branch
          %382 = sbr.rel (%p380) target = $region36
        $region35: #{tpu_custom_call.1} parent=11 // pred_region
          _
        $region36: #{tpu_custom_call.1} parent=11 // pred_fallthru
          _
        // Predicated region
        $region37: #{tpu_custom_call.1} parent=11 // pred_check
          %p383 = pneg %p277
        $region38: #{tpu_custom_call.1} parent=11 // pred_check_branch
          %385 = sbr.rel (%p383) target = $region40
        $region39: #{tpu_custom_call.1} parent=11 // pred_region
          _
        $region40: #{tpu_custom_call.1} parent=11 // pred_fallthru
          _
        // Predicated region
        $region41: #{tpu_custom_call.1} parent=11 // pred_check
          %p386 = pneg %p298
        $region42: #{tpu_custom_call.1} parent=11 // pred_check_branch
          %388 = sbr.rel (%p386) target = $region44
        $region43: #{tpu_custom_call.1} parent=11 // pred_region
          _
        $region44: #{tpu_custom_call.1} parent=11 // pred_fallthru
          _
      $region12: #{tpu_custom_call.1} parent=5 // pred_fallthru
        _
      %p389 = scmp.lt.s32.totalorder %s26, 2
      // Predicated region
      $region45: #{tpu_custom_call.1} parent=5 // pred_check
        %p390 = pneg %p389
      $region46: #{tpu_custom_call.1} parent=5 // pred_check_branch
        %392 = sbr.rel (%p390) target = $region48
      $region47: #{tpu_custom_call.1} parent=5 // pred_region
        // Predicated region
        $region49: #{tpu_custom_call.1} parent=47 // pred_check
          %p393 = pneg %p46
        $region50: #{tpu_custom_call.1} parent=47 // pred_check_branch
          %395 = sbr.rel (%p393) target = $region52
        $region51: #{tpu_custom_call.1} parent=47 // pred_region
          %p396 = scmp.lt.s32.totalorder %s26, 1
          %s397 = scalar_select %p396, %s26, 1
          %s398 = smul.addr %s397, 8
          %s399 = scalar_lea.vmem %s0, %s398
        $region52: #{tpu_custom_call.1} parent=47 // pred_fallthru
          _
        // Predicated region
        $region53: #{tpu_custom_call.1} parent=47 // pred_check
          %p400 = pneg %p72
        $region54: #{tpu_custom_call.1} parent=47 // pred_check_branch
          %402 = sbr.rel (%p400) target = $region56
        $region55: #{tpu_custom_call.1} parent=47 // pred_region
          %p403 = scmp.lt.s32.totalorder %s26, 1
          %s404 = scalar_select %p403, %s26, 1
          %s405 = smul.addr %s404, 16
          %s406 = smul.addr %s405, 8
          %s407 = scalar_lea.vmem %s1, %s406
        $region56: #{tpu_custom_call.1} parent=47 // pred_fallthru
          _
        // Predicated region
        $region57: #{tpu_custom_call.1} parent=47 // pred_check
          %p408 = pneg %p98
        $region58: #{tpu_custom_call.1} parent=47 // pred_check_branch
          %410 = sbr.rel (%p408) target = $region60
        $region59: #{tpu_custom_call.1} parent=47 // pred_region
          %p411 = scmp.lt.s32.totalorder %s26, 1
          %s412 = scalar_select %p411, %s26, 1
          %s413 = smul.addr %s412, 16
          %s414 = smul.addr %s413, 8
          %s415 = scalar_lea.vmem %s2, %s414
        $region60: #{tpu_custom_call.1} parent=47 // pred_fallthru
          _
        // Predicated region
        $region61: #{tpu_custom_call.1} parent=47 // pred_check
          %p416 = pneg %p124
        $region62: #{tpu_custom_call.1} parent=47 // pred_check_branch
          %418 = sbr.rel (%p416) target = $region64
        $region63: #{tpu_custom_call.1} parent=47 // pred_region
          %p419 = scmp.lt.s32.totalorder %s26, 1
          %s420 = scalar_select %p419, %s26, 1
          %s421 = scalar_lea.vmem %s3, %s420
        $region64: #{tpu_custom_call.1} parent=47 // pred_fallthru
          _
      $region48: #{tpu_custom_call.1} parent=5 // pred_fallthru
        _
      %p422 = scmp.le.s32.totalorder 1, %s26
      %p423 = scmp.lt.s32.totalorder %s26, 3
      %p424 = pnand %p422, %p423
      %p425 = pneg %p424
      // Predicated region
      $region65: #{tpu_custom_call.1} parent=5 // pred_check
        _
      $region66: #{tpu_custom_call.1} parent=5 // pred_check_branch
        %427 = sbr.rel (%p424) target = $region68
      $region67: #{tpu_custom_call.1} parent=5 // pred_region
        %s428 = ssub.s32 %s26, 1
        %p429 = scmp.lt.s32.totalorder %s31, 1
        %s430 = scalar_select %p429, %s31, 1
        %s431 = smul.addr %s430, 8
        %s432 = scalar_lea.vmem %s0, %s431
        %p433 = pneg %p52
        %p434 = pneg %p49
        %p435 = scmp.lt.s32.totalorder %s31, 1
        %s436 = scalar_select %p435, %s31, 1
        %s437 = smul.addr %s436, 16
        %s438 = smul.addr %s437, 8
        %s439 = scalar_lea.vmem %s1, %s438
        %p440 = pneg %p78
        %p441 = pneg %p75
        %p442 = scmp.lt.s32.totalorder %s31, 1
        %s443 = scalar_select %p442, %s31, 1
        %s444 = smul.addr %s443, 16
        %s445 = smul.addr %s444, 8
        %s446 = scalar_lea.vmem %s2, %s445
        %p447 = pneg %p104
        %p448 = pneg %p101
        %p449 = scmp.lt.s32.totalorder %s31, 1
        %s450 = scalar_select %p449, %s31, 1
        %s451 = scalar_lea.vmem %s3, %s450
        %p452 = pneg %p130
        %p453 = pneg %p127
        %p454 = pneg %p151
        %p455 = pneg %p148
        %p456 = pneg %p172
        %p457 = pneg %p169
        %p458 = pneg %p193
        %p459 = pneg %p190
        %p460 = pneg %p214
        %p461 = pneg %p211
        %p462 = pneg %p235
        %p463 = pneg %p232
        %p464 = pneg %p256
        %p465 = pneg %p253
        %p466 = pneg %p277
        %p467 = pneg %p274
        %p468 = pneg %p298
        %p469 = pneg %p295
        %p470 = pneg %p324
        %p471 = pneg %p321
        %s472 = sand.u32 %s311, 1
        %s473 = scalar_lea.sflag [#allocation3], %s472
        %s474 = sand.u32 %s311, 1
        %s475 = smul.addr %s474, 8
        %s476 = scalar_lea.vmem [#allocation2], %s475
        %p477 = pneg %p350
        %p478 = pneg %p347
        %s479 = sand.u32 %s337, 1
        %s480 = scalar_lea.sflag [#allocation5], %s479
        %s481 = sand.u32 %s337, 1
        %s482 = smul.addr %s481, 8
        %s483 = scalar_lea.vmem [#allocation4], %s482
        %p484 = scmp.lt.s32.totalorder %s31, 1
        %s485 = scalar_select %p484, %s31, 1
        %s486 = smul.addr %s485, 8
        %s487 = scalar_lea.vmem %s0, %s486
        %p488 = scmp.lt.s32.totalorder %s31, 1
        %s489 = scalar_select %p488, %s31, 1
        %s490 = smul.addr %s489, 16
        %s491 = smul.addr %s490, 8
        %s492 = scalar_lea.vmem %s1, %s491
        %p493 = scmp.lt.s32.totalorder %s31, 1
        %s494 = scalar_select %p493, %s31, 1
        %s495 = smul.addr %s494, 16
        %s496 = smul.addr %s495, 8
        %s497 = scalar_lea.vmem %s2, %s496
        %p498 = scmp.lt.s32.totalorder %s31, 1
        %s499 = scalar_select %p498, %s31, 1
        %s500 = scalar_lea.vmem %s3, %s499
        %v502 = vld [vmem:[%s487] sm:$0xff]
        %v503 = vld [vmem:[%s492] sm:$0xff]
        %v504 = vld [vmem:[%s492 + $0x8] sm:$0xff]
        %v505 = vld [vmem:[%s492 + $0x10] sm:$0xff]
        %v506 = vld [vmem:[%s492 + $0x18] sm:$0xff]
        %v507 = vld [vmem:[%s492 + $0x20] sm:$0xff]
        %v508 = vld [vmem:[%s492 + $0x28] sm:$0xff]
        %v509 = vld [vmem:[%s492 + $0x30] sm:$0xff]
        %v510 = vld [vmem:[%s492 + $0x38] sm:$0xff]
        %v511 = vld [vmem:[%s492 + $0x40] sm:$0xff]
        %v512 = vld [vmem:[%s492 + $0x48] sm:$0xff]
        %v513 = vld [vmem:[%s492 + $0x50] sm:$0xff]
        %v514 = vld [vmem:[%s492 + $0x58] sm:$0xff]
        %v515 = vld [vmem:[%s492 + $0x60] sm:$0xff]
        %v516 = vld [vmem:[%s492 + $0x68] sm:$0xff]
        %v517 = vld [vmem:[%s492 + $0x70] sm:$0xff]
        %v518 = vld [vmem:[%s492 + $0x78] sm:$0xff]
        %v519 = vld [vmem:[%s497] sm:$0xff]
        %v520 = vld [vmem:[%s497 + $0x8] sm:$0xff]
        %v521 = vld [vmem:[%s497 + $0x10] sm:$0xff]
        %v522 = vld [vmem:[%s497 + $0x18] sm:$0xff]
        %v523 = vld [vmem:[%s497 + $0x20] sm:$0xff]
        %v524 = vld [vmem:[%s497 + $0x28] sm:$0xff]
        %v525 = vld [vmem:[%s497 + $0x30] sm:$0xff]
        %v526 = vld [vmem:[%s497 + $0x38] sm:$0xff]
        %v527 = vld [vmem:[%s497 + $0x40] sm:$0xff]
        %v528 = vld [vmem:[%s497 + $0x48] sm:$0xff]
        %v529 = vld [vmem:[%s497 + $0x50] sm:$0xff]
        %v530 = vld [vmem:[%s497 + $0x58] sm:$0xff]
        %v531 = vld [vmem:[%s497 + $0x60] sm:$0xff]
        %v532 = vld [vmem:[%s497 + $0x68] sm:$0xff]
        %v533 = vld [vmem:[%s497 + $0x70] sm:$0xff]
        %v534 = vld [vmem:[%s497 + $0x78] sm:$0xff]
        %v535 = vld [vmem:[%s4] sm:$0xff]
        %v536 = vld [vmem:[%s4 + $0x8] sm:$0xff]
        %v537 = vld [vmem:[%s4 + $0x10] sm:$0xff]
        %v538 = vld [vmem:[%s4 + $0x18] sm:$0xff]
        %v539 = vld [vmem:[%s5] sm:$0x1]
        %v541 = vlaneseq
        %v542 = vshrl.u32 %v541, 7
        %v543 = vsub.s32 0, %v542
        %v544 = vrot.slane %v539, %v543
        %vm546 = vcmask 261120
        %v548 = vsel %vm546, %v502, 0
        %550 = vmatprep.subr.mxu0 0.0
        %551 = vmatpush1.msra.mxu0 %v535
        %552 = vmatprep.subr.mxu0 0.0
        %553 = vmatpush1.msra.mxu0 %v536
        %554 = vmatprep.subr.mxu0 0.0
        %555 = vmatpush1.msra.mxu0 %v537
        %556 = vmatprep.subr.mxu0 0.0
        %557 = vmatpush1.msra.mxu0 %v538
        %558 = vmatprep.subr.mxu0 0.0
        %559 = vmatpush1.msra.mxu0 0.0
        %560 = vmatprep.subr.mxu0 0.0
        %561 = vmatpush1.msra.mxu0 0.0
        %562 = vmatprep.subr.mxu0 0.0
        %563 = vmatpush1.msra.mxu0 0.0
        %564 = vmatprep.subr.mxu0 0.0
        %565 = vmatpush1.msra.mxu0 0.0
        %566 = vmatprep.subr.mxu0 0.0
        %567 = vmatpush1.msra.mxu0 0.0
        %568 = vmatprep.subr.mxu0 0.0
        %569 = vmatpush1.msra.mxu0 0.0
        %570 = vmatprep.subr.mxu0 0.0
        %571 = vmatpush1.msra.mxu0 0.0
        %572 = vmatprep.subr.mxu0 0.0
        %573 = vmatpush1.msra.mxu0 0.0
        %574 = vmatprep.subr.mxu0 0.0
        %575 = vmatpush1.msra.mxu0 0.0
        %576 = vmatprep.subr.mxu0 0.0
        %577 = vmatpush1.msra.mxu0 0.0
        %578 = vmatprep.subr.mxu0 0.0
        %579 = vmatpush1.msra.mxu0 0.0
        %580 = vmatprep.subr.mxu0 0.0
        %581 = vmatpush1.msra.mxu0 0.0
        %582 = vmatprep.subr.mxu0 0.0
        %583 = vmatpush1.msra.mxu0 0.0
        %584 = vmatprep.subr.mxu0 0.0
        %585 = vmatpush1.msra.mxu0 0.0
        %586 = vmatprep.subr.mxu0 0.0
        %587 = vmatpush1.msra.mxu0 0.0
        %588 = vmatprep.subr.mxu0 0.0
        %589 = vmatpush1.msra.mxu0 0.0
        %590 = vmatprep.subr.mxu0 0.0
        %591 = vmatpush1.msra.mxu0 0.0
        %592 = vmatprep.subr.mxu0 0.0
        %593 = vmatpush1.msra.mxu0 0.0
        %594 = vmatprep.subr.mxu0 0.0
        %595 = vmatpush1.msra.mxu0 0.0
        %596 = vmatprep.subr.mxu0 0.0
        %597 = vmatpush1.msra.mxu0 0.0
        %598 = vmatprep.subr.mxu0 0.0
        %599 = vmatpush1.msra.mxu0 0.0
        %600 = vmatprep.subr.mxu0 0.0
        %601 = vmatpush1.msra.mxu0 0.0
        %602 = vmatprep.subr.mxu0 0.0
        %603 = vmatpush1.msra.mxu0 0.0
        %604 = vmatprep.subr.mxu0 0.0
        %605 = vmatpush1.msra.mxu0 0.0
        %606 = vmatprep.subr.mxu0 0.0
        %607 = vmatpush1.msra.mxu0 0.0
        %608 = vmatprep.subr.mxu0 0.0
        %609 = vmatpush1.msra.mxu0 0.0
        %610 = vmatprep.subr.mxu0 0.0
        %611 = vmatpush1.msra.mxu0 0.0
        %612 = vmatprep.subr.mxu0 0.0
        %613 = vmatpush1.msra.mxu0 0.0
        %614 = vmatprep.mubr.f32.mxu0 0.0
        %615 = vmatmul.mubr.f32.gmra.mrb[0].mxu0 %v548
        %v616 = vpop.f32.mrb[0].mxu0
        %v617 = vadd.f32 %v544, %v616
        %v618 = vpop.f32.mrb[0].mxu0
        %619 = vdwg.mxu0
        %v620 = vld [vmem:[%s6] sm:$0xff]
        %v621 = vld [vmem:[%s6 + $0x8] sm:$0xff]
        %v622 = vld [vmem:[%s6 + $0x10] sm:$0xff]
        %v623 = vld [vmem:[%s6 + $0x18] sm:$0xff]
        %v624 = vld [vmem:[%s6 + $0x20] sm:$0xff]
        %v625 = vld [vmem:[%s6 + $0x28] sm:$0xff]
        %v626 = vld [vmem:[%s7] sm:$0x1]
        %v628 = vlaneseq
        %v629 = vshrl.u32 %v628, 7
        %v630 = vsub.s32 0, %v629
        %v631 = vrot.slane %v626, %v630
        %vm633 = vcmask 392192
        %v635 = vsel %vm633, %v503, 0
        %v638 = vsel %vm633, %v504, 0
        %v641 = vsel %vm633, %v505, 0
        %v644 = vsel %vm633, %v506, 0
        %v647 = vsel %vm633, %v507, 0
        %v650 = vsel %vm633, %v508, 0
        %v653 = vsel %vm633, %v509, 0
        %v656 = vsel %vm633, %v510, 0
        %v659 = vsel %vm633, %v511, 0
        %v662 = vsel %vm633, %v512, 0
        %v665 = vsel %vm633, %v513, 0
        %v668 = vsel %vm633, %v514, 0
        %v671 = vsel %vm633, %v515, 0
        %v674 = vsel %vm633, %v516, 0
        %v677 = vsel %vm633, %v517, 0
        %v680 = vsel %vm633, %v518, 0
        %682 = vmatprep.subr.mxu0 0.0
        %683 = vmatpush1.msra.mxu0 %v620
        %684 = vmatprep.subr.mxu0 0.0
        %685 = vmatpush1.msra.mxu0 %v621
        %686 = vmatprep.subr.mxu0 0.0
        %687 = vmatpush1.msra.mxu0 %v622
        %688 = vmatprep.subr.mxu0 0.0
        %689 = vmatpush1.msra.mxu0 %v623
        %690 = vmatprep.subr.mxu0 0.0
        %691 = vmatpush1.msra.mxu0 %v624
        %692 = vmatprep.subr.mxu0 0.0
        %693 = vmatpush1.msra.mxu0 %v625
        %694 = vmatprep.subr.mxu0 0.0
        %695 = vmatpush1.msra.mxu0 0.0
        %696 = vmatprep.subr.mxu0 0.0
        %697 = vmatpush1.msra.mxu0 0.0
        %698 = vmatprep.subr.mxu0 0.0
        %699 = vmatpush1.msra.mxu0 0.0
        %700 = vmatprep.subr.mxu0 0.0
        %701 = vmatpush1.msra.mxu0 0.0
        %702 = vmatprep.subr.mxu0 0.0
        %703 = vmatpush1.msra.mxu0 0.0
        %704 = vmatprep.subr.mxu0 0.0
        %705 = vmatpush1.msra.mxu0 0.0
        %706 = vmatprep.subr.mxu0 0.0
        %707 = vmatpush1.msra.mxu0 0.0
        %708 = vmatprep.subr.mxu0 0.0
        %709 = vmatpush1.msra.mxu0 0.0
        %710 = vmatprep.subr.mxu0 0.0
        %711 = vmatpush1.msra.mxu0 0.0
        %712 = vmatprep.subr.mxu0 0.0
        %713 = vmatpush1.msra.mxu0 0.0
        %714 = vmatprep.subr.mxu0 0.0
        %715 = vmatpush1.msra.mxu0 0.0
        %716 = vmatprep.subr.mxu0 0.0
        %717 = vmatpush1.msra.mxu0 0.0
        %718 = vmatprep.subr.mxu0 0.0
        %719 = vmatpush1.msra.mxu0 0.0
        %720 = vmatprep.subr.mxu0 0.0
        %721 = vmatpush1.msra.mxu0 0.0
        %722 = vmatprep.subr.mxu0 0.0
        %723 = vmatpush1.msra.mxu0 0.0
        %724 = vmatprep.subr.mxu0 0.0
        %725 = vmatpush1.msra.mxu0 0.0
        %726 = vmatprep.subr.mxu0 0.0
        %727 = vmatpush1.msra.mxu0 0.0
        %728 = vmatprep.subr.mxu0 0.0
        %729 = vmatpush1.msra.mxu0 0.0
        %730 = vmatprep.subr.mxu0 0.0
        %731 = vmatpush1.msra.mxu0 0.0
        %732 = vmatprep.subr.mxu0 0.0
        %733 = vmatpush1.msra.mxu0 0.0
        %734 = vmatprep.subr.mxu0 0.0
        %735 = vmatpush1.msra.mxu0 0.0
        %736 = vmatprep.subr.mxu0 0.0
        %737 = vmatpush1.msra.mxu0 0.0
        %738 = vmatprep.subr.mxu0 0.0
        %739 = vmatpush1.msra.mxu0 0.0
        %740 = vmatprep.subr.mxu0 0.0
        %741 = vmatpush1.msra.mxu0 0.0
        %742 = vmatprep.subr.mxu0 0.0
        %743 = vmatpush1.msra.mxu0 0.0
        %744 = vmatprep.subr.mxu0 0.0
        %745 = vmatpush1.msra.mxu0 0.0
        %746 = vmatprep.mubr.f32.mxu0 0.0
        %747 = vmatmul.mubr.f32.gmra.mrb[0].mxu0 %v635
        %v748 = vpop.f32.mrb[0].mxu0
        %v749 = vadd.f32 %v631, %v748
        %v750 = vpop.f32.mrb[0].mxu0
        %751 = vmatprep.mubr.f32.mxu0 0.0
        %752 = vmatmul.mubr.f32.gmra.mrb[0].mxu0 %v638
        %v753 = vpop.f32.mrb[0].mxu0
        %v754 = vadd.f32 %v631, %v753
        %v755 = vpop.f32.mrb[0].mxu0
        %756 = vmatprep.mubr.f32.mxu0 0.0
        %757 = vmatmul.mubr.f32.gmra.mrb[0].mxu0 %v641
        %v758 = vpop.f32.mrb[0].mxu0
        %v759 = vadd.f32 %v631, %v758
        %v760 = vpop.f32.mrb[0].mxu0
        %761 = vmatprep.mubr.f32.mxu0 0.0
        %762 = vmatmul.mubr.f32.gmra.mrb[0].mxu0 %v644
        %v763 = vpop.f32.mrb[0].mxu0
        %v764 = vadd.f32 %v631, %v763
        %v765 = vpop.f32.mrb[0].mxu0
        %766 = vmatprep.mubr.f32.mxu0 0.0
        %767 = vmatmul.mubr.f32.gmra.mrb[0].mxu0 %v647
        %v768 = vpop.f32.mrb[0].mxu0
        %v769 = vadd.f32 %v631, %v768
        %v770 = vpop.f32.mrb[0].mxu0
        %771 = vmatprep.mubr.f32.mxu0 0.0
        %772 = vmatmul.mubr.f32.gmra.mrb[0].mxu0 %v650
        %v773 = vpop.f32.mrb[0].mxu0
        %v774 = vadd.f32 %v631, %v773
        %v775 = vpop.f32.mrb[0].mxu0
        %776 = vmatprep.mubr.f32.mxu0 0.0
        %777 = vmatmul.mubr.f32.gmra.mrb[0].mxu0 %v653
        %v778 = vpop.f32.mrb[0].mxu0
        %v779 = vadd.f32 %v631, %v778
        %v780 = vpop.f32.mrb[0].mxu0
        %781 = vmatprep.mubr.f32.mxu0 0.0
        %782 = vmatmul.mubr.f32.gmra.mrb[0].mxu0 %v656
        %v783 = vpop.f32.mrb[0].mxu0
        %v784 = vadd.f32 %v631, %v783
        %v785 = vpop.f32.mrb[0].mxu0
        %786 = vmatprep.mubr.f32.mxu0 0.0
        %787 = vmatmul.mubr.f32.gmra.mrb[0].mxu0 %v659
        %v788 = vpop.f32.mrb[0].mxu0
        %v789 = vadd.f32 %v631, %v788
        %v790 = vpop.f32.mrb[0].mxu0
        %791 = vmatprep.mubr.f32.mxu0 0.0
        %792 = vmatmul.mubr.f32.gmra.mrb[0].mxu0 %v662
        %v793 = vpop.f32.mrb[0].mxu0
        %v794 = vadd.f32 %v631, %v793
        %v795 = vpop.f32.mrb[0].mxu0
        %796 = vmatprep.mubr.f32.mxu0 0.0
        %797 = vmatmul.mubr.f32.gmra.mrb[0].mxu0 %v665
        %v798 = vpop.f32.mrb[0].mxu0
        %v799 = vadd.f32 %v631, %v798
        %v800 = vpop.f32.mrb[0].mxu0
        %801 = vmatprep.mubr.f32.mxu0 0.0
        %802 = vmatmul.mubr.f32.gmra.mrb[0].mxu0 %v668
        %v803 = vpop.f32.mrb[0].mxu0
        %v804 = vadd.f32 %v631, %v803
        %v805 = vpop.f32.mrb[0].mxu0
        %806 = vmatprep.mubr.f32.mxu0 0.0
        %807 = vmatmul.mubr.f32.gmra.mrb[0].mxu0 %v671
        %v808 = vpop.f32.mrb[0].mxu0
        %v809 = vadd.f32 %v631, %v808
        %v810 = vpop.f32.mrb[0].mxu0
        %811 = vmatprep.mubr.f32.mxu0 0.0
        %812 = vmatmul.mubr.f32.gmra.mrb[0].mxu0 %v674
        %v813 = vpop.f32.mrb[0].mxu0
        %v814 = vadd.f32 %v631, %v813
        %v815 = vpop.f32.mrb[0].mxu0
        %816 = vmatprep.mubr.f32.mxu0 0.0
        %817 = vmatmul.mubr.f32.gmra.mrb[0].mxu0 %v677
        %v818 = vpop.f32.mrb[0].mxu0
        %v819 = vadd.f32 %v631, %v818
        %v820 = vpop.f32.mrb[0].mxu0
        %821 = vmatprep.mubr.f32.mxu0 0.0
        %822 = vmatmul.mubr.f32.gmra.mrb[0].mxu0 %v680
        %v823 = vpop.f32.mrb[0].mxu0
        %v824 = vadd.f32 %v631, %v823
        %v825 = vpop.f32.mrb[0].mxu0
        %826 = vdwg.mxu0
        %v827 = vld [vmem:[%s8] sm:$0xff]
        %v828 = vld [vmem:[%s8 + $0x8] sm:$0xff]
        %v829 = vld [vmem:[%s8 + $0x10] sm:$0xff]
        %v830 = vld [vmem:[%s8 + $0x18] sm:$0xff]
        %v831 = vld [vmem:[%s8 + $0x20] sm:$0xff]
        %v832 = vld [vmem:[%s8 + $0x28] sm:$0xff]
        %v833 = vld [vmem:[%s9] sm:$0x1]
        %v835 = vlaneseq
        %v836 = vshrl.u32 %v835, 7
        %v837 = vsub.s32 0, %v836
        %v838 = vrot.slane %v833, %v837
        %v841 = vsel %vm633, %v519, 0
        %v844 = vsel %vm633, %v520, 0
        %v847 = vsel %vm633, %v521, 0
        %v850 = vsel %vm633, %v522, 0
        %v853 = vsel %vm633, %v523, 0
        %v856 = vsel %vm633, %v524, 0
        %v859 = vsel %vm633, %v525, 0
        %v862 = vsel %vm633, %v526, 0
        %v865 = vsel %vm633, %v527, 0
        %v868 = vsel %vm633, %v528, 0
        %v871 = vsel %vm633, %v529, 0
        %v874 = vsel %vm633, %v530, 0
        %v877 = vsel %vm633, %v531, 0
        %v880 = vsel %vm633, %v532, 0
        %v883 = vsel %vm633, %v533, 0
        %v886 = vsel %vm633, %v534, 0
        %888 = vmatprep.subr.mxu0 0.0
        %889 = vmatpush1.msra.mxu0 %v827
        %890 = vmatprep.subr.mxu0 0.0
        %891 = vmatpush1.msra.mxu0 %v828
        %892 = vmatprep.subr.mxu0 0.0
        %893 = vmatpush1.msra.mxu0 %v829
        %894 = vmatprep.subr.mxu0 0.0
        %895 = vmatpush1.msra.mxu0 %v830
        %896 = vmatprep.subr.mxu0 0.0
        %897 = vmatpush1.msra.mxu0 %v831
        %898 = vmatprep.subr.mxu0 0.0
        %899 = vmatpush1.msra.mxu0 %v832
        %900 = vmatprep.subr.mxu0 0.0
        %901 = vmatpush1.msra.mxu0 0.0
        %902 = vmatprep.subr.mxu0 0.0
        %903 = vmatpush1.msra.mxu0 0.0
        %904 = vmatprep.subr.mxu0 0.0
        %905 = vmatpush1.msra.mxu0 0.0
        %906 = vmatprep.subr.mxu0 0.0
        %907 = vmatpush1.msra.mxu0 0.0
        %908 = vmatprep.subr.mxu0 0.0
        %909 = vmatpush1.msra.mxu0 0.0
        %910 = vmatprep.subr.mxu0 0.0
        %911 = vmatpush1.msra.mxu0 0.0
        %912 = vmatprep.subr.mxu0 0.0
        %913 = vmatpush1.msra.mxu0 0.0
        %914 = vmatprep.subr.mxu0 0.0
        %915 = vmatpush1.msra.mxu0 0.0
        %916 = vmatprep.subr.mxu0 0.0
        %917 = vmatpush1.msra.mxu0 0.0
        %918 = vmatprep.subr.mxu0 0.0
        %919 = vmatpush1.msra.mxu0 0.0
        %920 = vmatprep.subr.mxu0 0.0
        %921 = vmatpush1.msra.mxu0 0.0
        %922 = vmatprep.subr.mxu0 0.0
        %923 = vmatpush1.msra.mxu0 0.0
        %924 = vmatprep.subr.mxu0 0.0
        %925 = vmatpush1.msra.mxu0 0.0
        %926 = vmatprep.subr.mxu0 0.0
        %927 = vmatpush1.msra.mxu0 0.0
        %928 = vmatprep.subr.mxu0 0.0
        %929 = vmatpush1.msra.mxu0 0.0
        %930 = vmatprep.subr.mxu0 0.0
        %931 = vmatpush1.msra.mxu0 0.0
        %932 = vmatprep.subr.mxu0 0.0
        %933 = vmatpush1.msra.mxu0 0.0
        %934 = vmatprep.subr.mxu0 0.0
        %935 = vmatpush1.msra.mxu0 0.0
        %936 = vmatprep.subr.mxu0 0.0
        %937 = vmatpush1.msra.mxu0 0.0
        %938 = vmatprep.subr.mxu0 0.0
        %939 = vmatpush1.msra.mxu0 0.0
        %940 = vmatprep.subr.mxu0 0.0
        %941 = vmatpush1.msra.mxu0 0.0
        %942 = vmatprep.subr.mxu0 0.0
        %943 = vmatpush1.msra.mxu0 0.0
        %944 = vmatprep.subr.mxu0 0.0
        %945 = vmatpush1.msra.mxu0 0.0
        %946 = vmatprep.subr.mxu0 0.0
        %947 = vmatpush1.msra.mxu0 0.0
        %948 = vmatprep.subr.mxu0 0.0
        %949 = vmatpush1.msra.mxu0 0.0
        %950 = vmatprep.subr.mxu0 0.0
        %951 = vmatpush1.msra.mxu0 0.0
        %952 = vmatprep.mubr.f32.mxu0 0.0
        %953 = vmatmul.mubr.f32.gmra.mrb[0].mxu0 %v841
        %v954 = vpop.f32.mrb[0].mxu0
        %v955 = vadd.f32 %v838, %v954
        %v956 = vpop.f32.mrb[0].mxu0
        %957 = vmatprep.mubr.f32.mxu0 0.0
        %958 = vmatmul.mubr.f32.gmra.mrb[0].mxu0 %v844
        %v959 = vpop.f32.mrb[0].mxu0
        %v960 = vadd.f32 %v838, %v959
        %v961 = vpop.f32.mrb[0].mxu0
        %962 = vmatprep.mubr.f32.mxu0 0.0
        %963 = vmatmul.mubr.f32.gmra.mrb[0].mxu0 %v847
        %v964 = vpop.f32.mrb[0].mxu0
        %v965 = vadd.f32 %v838, %v964
        %v966 = vpop.f32.mrb[0].mxu0
        %967 = vmatprep.mubr.f32.mxu0 0.0
        %968 = vmatmul.mubr.f32.gmra.mrb[0].mxu0 %v850
        %v969 = vpop.f32.mrb[0].mxu0
        %v970 = vadd.f32 %v838, %v969
        %v971 = vpop.f32.mrb[0].mxu0
        %972 = vmatprep.mubr.f32.mxu0 0.0
        %973 = vmatmul.mubr.f32.gmra.mrb[0].mxu0 %v853
        %v974 = vpop.f32.mrb[0].mxu0
        %v975 = vadd.f32 %v838, %v974
        %v976 = vpop.f32.mrb[0].mxu0
        %977 = vmatprep.mubr.f32.mxu0 0.0
        %978 = vmatmul.mubr.f32.gmra.mrb[0].mxu0 %v856
        %v979 = vpop.f32.mrb[0].mxu0
        %v980 = vadd.f32 %v838, %v979
        %v981 = vpop.f32.mrb[0].mxu0
        %982 = vmatprep.mubr.f32.mxu0 0.0
        %983 = vmatmul.mubr.f32.gmra.mrb[0].mxu0 %v859
        %v984 = vpop.f32.mrb[0].mxu0
        %v985 = vadd.f32 %v838, %v984
        %v986 = vpop.f32.mrb[0].mxu0
        %987 = vmatprep.mubr.f32.mxu0 0.0
        %988 = vmatmul.mubr.f32.gmra.mrb[0].mxu0 %v862
        %v989 = vpop.f32.mrb[0].mxu0
        %v990 = vadd.f32 %v838, %v989
        %v991 = vpop.f32.mrb[0].mxu0
        %992 = vmatprep.mubr.f32.mxu0 0.0
        %993 = vmatmul.mubr.f32.gmra.mrb[0].mxu0 %v865
        %v994 = vpop.f32.mrb[0].mxu0
        %v995 = vadd.f32 %v838, %v994
        %v996 = vpop.f32.mrb[0].mxu0
        %997 = vmatprep.mubr.f32.mxu0 0.0
        %998 = vmatmul.mubr.f32.gmra.mrb[0].mxu0 %v868
        %v999 = vpop.f32.mrb[0].mxu0
        %v1000 = vadd.f32 %v838, %v999
        %v1001 = vpop.f32.mrb[0].mxu0
        %1002 = vmatprep.mubr.f32.mxu0 0.0
        %1003 = vmatmul.mubr.f32.gmra.mrb[0].mxu0 %v871
        %v1004 = vpop.f32.mrb[0].mxu0
        %v1005 = vadd.f32 %v838, %v1004
        %v1006 = vpop.f32.mrb[0].mxu0
        %1007 = vmatprep.mubr.f32.mxu0 0.0
        %1008 = vmatmul.mubr.f32.gmra.mrb[0].mxu0 %v874
        %v1009 = vpop.f32.mrb[0].mxu0
        %v1010 = vadd.f32 %v838, %v1009
        %v1011 = vpop.f32.mrb[0].mxu0
        %1012 = vmatprep.mubr.f32.mxu0 0.0
        %1013 = vmatmul.mubr.f32.gmra.mrb[0].mxu0 %v877
        %v1014 = vpop.f32.mrb[0].mxu0
        %v1015 = vadd.f32 %v838, %v1014
        %v1016 = vpop.f32.mrb[0].mxu0
        %1017 = vmatprep.mubr.f32.mxu0 0.0
        %1018 = vmatmul.mubr.f32.gmra.mrb[0].mxu0 %v880
        %v1019 = vpop.f32.mrb[0].mxu0
        %v1020 = vadd.f32 %v838, %v1019
        %v1021 = vpop.f32.mrb[0].mxu0
        %1022 = vmatprep.mubr.f32.mxu0 0.0
        %1023 = vmatmul.mubr.f32.gmra.mrb[0].mxu0 %v883
        %v1024 = vpop.f32.mrb[0].mxu0
        %v1025 = vadd.f32 %v838, %v1024
        %v1026 = vpop.f32.mrb[0].mxu0
        %1027 = vmatprep.mubr.f32.mxu0 0.0
        %1028 = vmatmul.mubr.f32.gmra.mrb[0].mxu0 %v886
        %v1029 = vpop.f32.mrb[0].mxu0
        %v1030 = vadd.f32 %v838, %v1029
        %v1031 = vpop.f32.mrb[0].mxu0
        %1032 = vdwg.mxu0
        %v1033 = vpack.c.bf16 %v617, %v617
        %v1034 = vpack.c.bf16 %v754, %v749
        %v1035 = vpack.c.bf16 %v764, %v759
        %v1036 = vpack.c.bf16 %v774, %v769
        %v1037 = vpack.c.bf16 %v784, %v779
        %v1038 = vpack.c.bf16 %v794, %v789
        %v1039 = vpack.c.bf16 %v804, %v799
        %v1040 = vpack.c.bf16 %v814, %v809
        %v1041 = vpack.c.bf16 %v824, %v819
        %v1042 = vpack.c.bf16 %v960, %v955
        %v1043 = vpack.c.bf16 %v970, %v965
        %v1044 = vpack.c.bf16 %v980, %v975
        %v1045 = vpack.c.bf16 %v990, %v985
        %v1046 = vpack.c.bf16 %v1000, %v995
        %v1047 = vpack.c.bf16 %v1010, %v1005
        %v1048 = vpack.c.bf16 %v1020, %v1015
        %v1049 = vpack.c.bf16 %v1030, %v1025
        %v1050 = vld [vmem:[%s500] sm:$0x1]
        %v1052 = vlaneseq
        %v1053 = vshrl.u32 %v1052, 7
        %v1054 = vsub.s32 0, %v1053
        %v1055 = vrot.slane %v1050, %v1054
        %vm1057 = vcmask 130048
        %v1059 = vsel %vm1057, %v1033, 0
        %v1062 = vsel %vm1057, %v1034, 0
        %v1065 = vsel %vm1057, %v1035, 0
        %v1068 = vsel %vm1057, %v1036, 0
        %v1071 = vsel %vm1057, %v1037, 0
        %v1074 = vsel %vm1057, %v1038, 0
        %v1077 = vsel %vm1057, %v1039, 0
        %v1080 = vsel %vm1057, %v1040, 0
        %v1083 = vsel %vm1057, %v1041, 0
        %1085 = vmatprep.subr.bf16.mxu0 0
        %1086 = vmatpush1.bf16.xpose.msra.mxu0 %v1062
        %1087 = vmatprep.subr.bf16.mxu0 0
        %1088 = vmatpush1.bf16.xpose.msra.mxu0 %v1065
        %1089 = vmatprep.subr.bf16.mxu0 0
        %1090 = vmatpush1.bf16.xpose.msra.mxu0 %v1068
        %1091 = vmatprep.subr.bf16.mxu0 0
        %1092 = vmatpush1.bf16.xpose.msra.mxu0 %v1071
        %1093 = vmatprep.subr.bf16.mxu0 0
        %1094 = vmatpush1.bf16.xpose.msra.mxu0 %v1074
        %1095 = vmatprep.subr.bf16.mxu0 0
        %1096 = vmatpush1.bf16.xpose.msra.mxu0 %v1077
        %1097 = vmatprep.subr.bf16.mxu0 0
        %1098 = vmatpush1.bf16.xpose.msra.mxu0 %v1080
        %1099 = vmatprep.subr.bf16.mxu0 0
        %1100 = vmatpush1.bf16.xpose.msra.mxu0 %v1083
        %1101 = vmatprep.subr.bf16.mxu0 0
        %1102 = vmatpush1.bf16.xpose.msra.mxu0 0
        %1103 = vmatprep.subr.bf16.mxu0 0
        %1104 = vmatpush1.bf16.xpose.msra.mxu0 0
        %1105 = vmatprep.subr.bf16.mxu0 0
        %1106 = vmatpush1.bf16.xpose.msra.mxu0 0
        %1107 = vmatprep.subr.bf16.mxu0 0
        %1108 = vmatpush1.bf16.xpose.msra.mxu0 0
        %1109 = vmatprep.subr.bf16.mxu0 0
        %1110 = vmatpush1.bf16.xpose.msra.mxu0 0
        %1111 = vmatprep.subr.bf16.mxu0 0
        %1112 = vmatpush1.bf16.xpose.msra.mxu0 0
        %1113 = vmatprep.subr.bf16.mxu0 0
        %1114 = vmatpush1.bf16.xpose.msra.mxu0 0
        %1115 = vmatprep.subr.bf16.mxu0 0
        %1116 = vmatpush1.bf16.xpose.msra.mxu0 0
        %1117 = vmatprep.mubr.bf16.mxu0 0
        %1118 = vmatmul.mubr.bf16.gmra.mrb[0].mxu0 %v1059
        %v1119 = vpop.f32.mrb[0].mxu0
        %v1120 = vadd.f32 %v1055, %v1119
        %v1121 = vpop.f32.mrb[0].mxu0
        %v1122 = vpop.f32.mrb[0].mxu0
        %v1123 = vpop.f32.mrb[0].mxu0
        %1124 = vdwg.mxu0
        %1125 = vmax.xlane.f32.xlu0 %v1120
        %v1126 = vpop.xlane.xlu0 %1125
        %v1127 = vsub.f32 %v1120, %v1126
        %v1128 = vmul.f32 %v1127, 1.442695
        %v1129 = vpow.pop %v1128
        %1130 = vadd.xlane.f32.xlu0 %v1129
        %v1131 = vpop.xlane.xlu0 %1130
        %v1132 = vrcp.pop %v1131
        %v1133 = vmul.f32 %v1129, %v1132
        %v1134 = vadd.f32 %v1133, 0.0
        %v1135 = vpack.c.bf16 %v1133, %v1133
        %1136 = vmatprep.subr.bf16.mxu0 0
        %1137 = vmatpush1.bf16.msra.mxu0 %v1042
        %1138 = vmatprep.subr.bf16.mxu0 0
        %1139 = vmatpush1.bf16.msra.mxu0 %v1043
        %1140 = vmatprep.subr.bf16.mxu0 0
        %1141 = vmatpush1.bf16.msra.mxu0 %v1044
        %1142 = vmatprep.subr.bf16.mxu0 0
        %1143 = vmatpush1.bf16.msra.mxu0 %v1045
        %1144 = vmatprep.subr.bf16.mxu0 0
        %1145 = vmatpush1.bf16.msra.mxu0 %v1046
        %1146 = vmatprep.subr.bf16.mxu0 0
        %1147 = vmatpush1.bf16.msra.mxu0 %v1047
        %1148 = vmatprep.subr.bf16.mxu0 0
        %1149 = vmatpush1.bf16.msra.mxu0 %v1048
        %1150 = vmatprep.subr.bf16.mxu0 0
        %1151 = vmatpush1.bf16.msra.mxu0 %v1049
        %1152 = vmatprep.subr.bf16.mxu0 0
        %1153 = vmatpush1.bf16.msra.mxu0 0
        %1154 = vmatprep.subr.bf16.mxu0 0
        %1155 = vmatpush1.bf16.msra.mxu0 0
        %1156 = vmatprep.subr.bf16.mxu0 0
        %1157 = vmatpush1.bf16.msra.mxu0 0
        %1158 = vmatprep.subr.bf16.mxu0 0
        %1159 = vmatpush1.bf16.msra.mxu0 0
        %1160 = vmatprep.subr.bf16.mxu0 0
        %1161 = vmatpush1.bf16.msra.mxu0 0
        %1162 = vmatprep.subr.bf16.mxu0 0
        %1163 = vmatpush1.bf16.msra.mxu0 0
        %1164 = vmatprep.subr.bf16.mxu0 0
        %1165 = vmatpush1.bf16.msra.mxu0 0
        %1166 = vmatprep.subr.bf16.mxu0 0
        %1167 = vmatpush1.bf16.msra.mxu0 0
        %1168 = vmatprep.mubr.bf16.mxu0 0
        %1169 = vmatmul.mubr.bf16.gmra.mrb[0].mxu0 %v1135
        %v1170 = vpop.f32.mrb[0].mxu0
        %v1171 = vadd.f32 0.0, %v1170
        %v1172 = vpop.f32.mrb[0].mxu0
        %v1173 = vpop.f32.mrb[0].mxu0
        %v1174 = vpop.f32.mrb[0].mxu0
        %1175 = vdwg.mxu0
        %1177 = vrot.lane.b32.xlu0 %v1033, 112
        %v1178 = vpop.permute.xlu0 %1177
        %1187 = vrot.lane.b32.xlu0 %v1034, 112
        %v1188 = vpop.permute.xlu0 %1187
        %1189 = vrot.lane.b32.xlu0 %v1035, 112
        %v1190 = vpop.permute.xlu0 %1189
        %1191 = vrot.lane.b32.xlu0 %v1036, 112
        %v1192 = vpop.permute.xlu0 %1191
        %1193 = vrot.lane.b32.xlu0 %v1037, 112
        %v1194 = vpop.permute.xlu0 %1193
        %1195 = vrot.lane.b32.xlu0 %v1038, 112
        %v1196 = vpop.permute.xlu0 %1195
        %1197 = vrot.lane.b32.xlu0 %v1039, 112
        %v1198 = vpop.permute.xlu0 %1197
        %1199 = vrot.lane.b32.xlu0 %v1040, 112
        %v1200 = vpop.permute.xlu0 %1199
        %1201 = vrot.lane.b32.xlu0 %v1041, 112
        %v1202 = vpop.permute.xlu0 %1201
        %v1204 = vsel %vm1057, %v1178, 0
        %v1207 = vsel %vm1057, %v1188, 0
        %v1210 = vsel %vm1057, %v1190, 0
        %v1213 = vsel %vm1057, %v1192, 0
        %v1216 = vsel %vm1057, %v1194, 0
        %v1219 = vsel %vm1057, %v1196, 0
        %v1222 = vsel %vm1057, %v1198, 0
        %v1225 = vsel %vm1057, %v1200, 0
        %v1228 = vsel %vm1057, %v1202, 0
        %1230 = vmatprep.subr.bf16.mxu0 0
        %1231 = vmatpush1.bf16.xpose.msra.mxu0 %v1207
        %1232 = vmatprep.subr.bf16.mxu0 0
        %1233 = vmatpush1.bf16.xpose.msra.mxu0 %v1210
        %1234 = vmatprep.subr.bf16.mxu0 0
        %1235 = vmatpush1.bf16.xpose.msra.mxu0 %v1213
        %1236 = vmatprep.subr.bf16.mxu0 0
        %1237 = vmatpush1.bf16.xpose.msra.mxu0 %v1216
        %1238 = vmatprep.subr.bf16.mxu0 0
        %1239 = vmatpush1.bf16.xpose.msra.mxu0 %v1219
        %1240 = vmatprep.subr.bf16.mxu0 0
        %1241 = vmatpush1.bf16.xpose.msra.mxu0 %v1222
        %1242 = vmatprep.subr.bf16.mxu0 0
        %1243 = vmatpush1.bf16.xpose.msra.mxu0 %v1225
        %1244 = vmatprep.subr.bf16.mxu0 0
        %1245 = vmatpush1.bf16.xpose.msra.mxu0 %v1228
        %1246 = vmatprep.subr.bf16.mxu0 0
        %1247 = vmatpush1.bf16.xpose.msra.mxu0 0
        %1248 = vmatprep.subr.bf16.mxu0 0
        %1249 = vmatpush1.bf16.xpose.msra.mxu0 0
        %1250 = vmatprep.subr.bf16.mxu0 0
        %1251 = vmatpush1.bf16.xpose.msra.mxu0 0
        %1252 = vmatprep.subr.bf16.mxu0 0
        %1253 = vmatpush1.bf16.xpose.msra.mxu0 0
        %1254 = vmatprep.subr.bf16.mxu0 0
        %1255 = vmatpush1.bf16.xpose.msra.mxu0 0
        %1256 = vmatprep.subr.bf16.mxu0 0
        %1257 = vmatpush1.bf16.xpose.msra.mxu0 0
        %1258 = vmatprep.subr.bf16.mxu0 0
        %1259 = vmatpush1.bf16.xpose.msra.mxu0 0
        %1260 = vmatprep.subr.bf16.mxu0 0
        %1261 = vmatpush1.bf16.xpose.msra.mxu0 0
        %1262 = vmatprep.mubr.bf16.mxu0 0
        %1263 = vmatmul.mubr.bf16.gmra.mrb[0].mxu0 %v1204
        %v1264 = vpop.f32.mrb[0].mxu0
        %v1265 = vadd.f32 %v1055, %v1264
        %v1266 = vpop.f32.mrb[0].mxu0
        %v1267 = vpop.f32.mrb[0].mxu0
        %v1268 = vpop.f32.mrb[0].mxu0
        %1269 = vdwg.mxu0
        %1270 = vmax.xlane.f32.xlu0 %v1265
        %v1271 = vpop.xlane.xlu0 %1270
        %v1272 = vsub.f32 %v1265, %v1271
        %v1273 = vmul.f32 %v1272, 1.442695
        %v1274 = vpow.pop %v1273
        %1275 = vadd.xlane.f32.xlu0 %v1274
        %v1276 = vpop.xlane.xlu0 %1275
        %v1277 = vrcp.pop %v1276
        %v1278 = vmul.f32 %v1274, %v1277
        %v1279 = vadd.f32 %v1134, %v1278
        %v1280 = vpack.c.bf16 %v1278, %v1278
        %1289 = vrot.lane.b32.xlu0 %v1042, 112
        %v1290 = vpop.permute.xlu0 %1289
        %1291 = vrot.lane.b32.xlu0 %v1043, 112
        %v1292 = vpop.permute.xlu0 %1291
        %1293 = vrot.lane.b32.xlu0 %v1044, 112
        %v1294 = vpop.permute.xlu0 %1293
        %1295 = vrot.lane.b32.xlu0 %v1045, 112
        %v1296 = vpop.permute.xlu0 %1295
        %1297 = vrot.lane.b32.xlu0 %v1046, 112
        %v1298 = vpop.permute.xlu0 %1297
        %1299 = vrot.lane.b32.xlu0 %v1047, 112
        %v1300 = vpop.permute.xlu0 %1299
        %1301 = vrot.lane.b32.xlu0 %v1048, 112
        %v1302 = vpop.permute.xlu0 %1301
        %1303 = vrot.lane.b32.xlu0 %v1049, 112
        %v1304 = vpop.permute.xlu0 %1303
        %1313 = vmatprep.subr.bf16.mxu0 0
        %1314 = vmatpush1.bf16.msra.mxu0 %v1290
        %1315 = vmatprep.subr.bf16.mxu0 0
        %1316 = vmatpush1.bf16.msra.mxu0 %v1292
        %1317 = vmatprep.subr.bf16.mxu0 0
        %1318 = vmatpush1.bf16.msra.mxu0 %v1294
        %1319 = vmatprep.subr.bf16.mxu0 0
        %1320 = vmatpush1.bf16.msra.mxu0 %v1296
        %1321 = vmatprep.subr.bf16.mxu0 0
        %1322 = vmatpush1.bf16.msra.mxu0 %v1298
        %1323 = vmatprep.subr.bf16.mxu0 0
        %1324 = vmatpush1.bf16.msra.mxu0 %v1300
        %1325 = vmatprep.subr.bf16.mxu0 0
        %1326 = vmatpush1.bf16.msra.mxu0 %v1302
        %1327 = vmatprep.subr.bf16.mxu0 0
        %1328 = vmatpush1.bf16.msra.mxu0 %v1304
        %1329 = vmatprep.subr.bf16.mxu0 0
        %1330 = vmatpush1.bf16.msra.mxu0 0
        %1331 = vmatprep.subr.bf16.mxu0 0
        %1332 = vmatpush1.bf16.msra.mxu0 0
        %1333 = vmatprep.subr.bf16.mxu0 0
        %1334 = vmatpush1.bf16.msra.mxu0 0
        %1335 = vmatprep.subr.bf16.mxu0 0
        %1336 = vmatpush1.bf16.msra.mxu0 0
        %1337 = vmatprep.subr.bf16.mxu0 0
        %1338 = vmatpush1.bf16.msra.mxu0 0
        %1339 = vmatprep.subr.bf16.mxu0 0
        %1340 = vmatpush1.bf16.msra.mxu0 0
        %1341 = vmatprep.subr.bf16.mxu0 0
        %1342 = vmatpush1.bf16.msra.mxu0 0
        %1343 = vmatprep.subr.bf16.mxu0 0
        %1344 = vmatpush1.bf16.msra.mxu0 0
        %1345 = vmatprep.mubr.bf16.mxu0 0
        %1346 = vmatmul.mubr.bf16.gmra.mrb[0].mxu0 %v1280
        %v1347 = vpop.f32.mrb[0].mxu0
        %v1348 = vadd.f32 0.0, %v1347
        %v1349 = vpop.f32.mrb[0].mxu0
        %v1350 = vpop.f32.mrb[0].mxu0
        %v1351 = vpop.f32.mrb[0].mxu0
        %1352 = vdwg.mxu0
        %1353 = vrot.lane.b32.xlu0 %v1033, 96
        %v1354 = vpop.permute.xlu0 %1353
        %1355 = vrot.lane.b32.xlu0 %v1034, 96
        %v1356 = vpop.permute.xlu0 %1355
        %1357 = vrot.lane.b32.xlu0 %v1035, 96
        %v1358 = vpop.permute.xlu0 %1357
        %1359 = vrot.lane.b32.xlu0 %v1036, 96
        %v1360 = vpop.permute.xlu0 %1359
        %1361 = vrot.lane.b32.xlu0 %v1037, 96
        %v1362 = vpop.permute.xlu0 %1361
        %1363 = vrot.lane.b32.xlu0 %v1038, 96
        %v1364 = vpop.permute.xlu0 %1363
        %1365 = vrot.lane.b32.xlu0 %v1039, 96
        %v1366 = vpop.permute.xlu0 %1365
        %1367 = vrot.lane.b32.xlu0 %v1040, 96
        %v1368 = vpop.permute.xlu0 %1367
        %1369 = vrot.lane.b32.xlu0 %v1041, 96
        %v1370 = vpop.permute.xlu0 %1369
        %v1372 = vsel %vm1057, %v1354, 0
        %v1375 = vsel %vm1057, %v1356, 0
        %v1378 = vsel %vm1057, %v1358, 0
        %v1381 = vsel %vm1057, %v1360, 0
        %v1384 = vsel %vm1057, %v1362, 0
        %v1387 = vsel %vm1057, %v1364, 0
        %v1390 = vsel %vm1057, %v1366, 0
        %v1393 = vsel %vm1057, %v1368, 0
        %v1396 = vsel %vm1057, %v1370, 0
        %1398 = vmatprep.subr.bf16.mxu0 0
        %1399 = vmatpush1.bf16.xpose.msra.mxu0 %v1375
        %1400 = vmatprep.subr.bf16.mxu0 0
        %1401 = vmatpush1.bf16.xpose.msra.mxu0 %v1378
        %1402 = vmatprep.subr.bf16.mxu0 0
        %1403 = vmatpush1.bf16.xpose.msra.mxu0 %v1381
        %1404 = vmatprep.subr.bf16.mxu0 0
        %1405 = vmatpush1.bf16.xpose.msra.mxu0 %v1384
        %1406 = vmatprep.subr.bf16.mxu0 0
        %1407 = vmatpush1.bf16.xpose.msra.mxu0 %v1387
        %1408 = vmatprep.subr.bf16.mxu0 0
        %1409 = vmatpush1.bf16.xpose.msra.mxu0 %v1390
        %1410 = vmatprep.subr.bf16.mxu0 0
        %1411 = vmatpush1.bf16.xpose.msra.mxu0 %v1393
        %1412 = vmatprep.subr.bf16.mxu0 0
        %1413 = vmatpush1.bf16.xpose.msra.mxu0 %v1396
        %1414 = vmatprep.subr.bf16.mxu0 0
        %1415 = vmatpush1.bf16.xpose.msra.mxu0 0
        %1416 = vmatprep.subr.bf16.mxu0 0
        %1417 = vmatpush1.bf16.xpose.msra.mxu0 0
        %1418 = vmatprep.subr.bf16.mxu0 0
        %1419 = vmatpush1.bf16.xpose.msra.mxu0 0
        %1420 = vmatprep.subr.bf16.mxu0 0
        %1421 = vmatpush1.bf16.xpose.msra.mxu0 0
        %1422 = vmatprep.subr.bf16.mxu0 0
        %1423 = vmatpush1.bf16.xpose.msra.mxu0 0
        %1424 = vmatprep.subr.bf16.mxu0 0
        %1425 = vmatpush1.bf16.xpose.msra.mxu0 0
        %1426 = vmatprep.subr.bf16.mxu0 0
        %1427 = vmatpush1.bf16.xpose.msra.mxu0 0
        %1428 = vmatprep.subr.bf16.mxu0 0
        %1429 = vmatpush1.bf16.xpose.msra.mxu0 0
        %1430 = vmatprep.mubr.bf16.mxu0 0
        %1431 = vmatmul.mubr.bf16.gmra.mrb[0].mxu0 %v1372
        %v1432 = vpop.f32.mrb[0].mxu0
        %v1433 = vadd.f32 %v1055, %v1432
        %v1434 = vpop.f32.mrb[0].mxu0
        %v1435 = vpop.f32.mrb[0].mxu0
        %v1436 = vpop.f32.mrb[0].mxu0
        %1437 = vdwg.mxu0
        %1438 = vmax.xlane.f32.xlu0 %v1433
        %v1439 = vpop.xlane.xlu0 %1438
        %v1440 = vsub.f32 %v1433, %v1439
        %v1441 = vmul.f32 %v1440, 1.442695
        %v1442 = vpow.pop %v1441
        %1443 = vadd.xlane.f32.xlu0 %v1442
        %v1444 = vpop.xlane.xlu0 %1443
        %v1445 = vrcp.pop %v1444
        %v1446 = vmul.f32 %v1442, %v1445
        %v1447 = vadd.f32 %v1279, %v1446
        %v1448 = vpack.c.bf16 %v1446, %v1446
        %1449 = vrot.lane.b32.xlu0 %v1042, 96
        %v1450 = vpop.permute.xlu0 %1449
        %1451 = vrot.lane.b32.xlu0 %v1043, 96
        %v1452 = vpop.permute.xlu0 %1451
        %1453 = vrot.lane.b32.xlu0 %v1044, 96
        %v1454 = vpop.permute.xlu0 %1453
        %1455 = vrot.lane.b32.xlu0 %v1045, 96
        %v1456 = vpop.permute.xlu0 %1455
        %1457 = vrot.lane.b32.xlu0 %v1046, 96
        %v1458 = vpop.permute.xlu0 %1457
        %1459 = vrot.lane.b32.xlu0 %v1047, 96
        %v1460 = vpop.permute.xlu0 %1459
        %1461 = vrot.lane.b32.xlu0 %v1048, 96
        %v1462 = vpop.permute.xlu0 %1461
        %1463 = vrot.lane.b32.xlu0 %v1049, 96
        %v1464 = vpop.permute.xlu0 %1463
        %1473 = vmatprep.subr.bf16.mxu0 0
        %1474 = vmatpush1.bf16.msra.mxu0 %v1450
        %1475 = vmatprep.subr.bf16.mxu0 0
        %1476 = vmatpush1.bf16.msra.mxu0 %v1452
        %1477 = vmatprep.subr.bf16.mxu0 0
        %1478 = vmatpush1.bf16.msra.mxu0 %v1454
        %1479 = vmatprep.subr.bf16.mxu0 0
        %1480 = vmatpush1.bf16.msra.mxu0 %v1456
        %1481 = vmatprep.subr.bf16.mxu0 0
        %1482 = vmatpush1.bf16.msra.mxu0 %v1458
        %1483 = vmatprep.subr.bf16.mxu0 0
        %1484 = vmatpush1.bf16.msra.mxu0 %v1460
        %1485 = vmatprep.subr.bf16.mxu0 0
        %1486 = vmatpush1.bf16.msra.mxu0 %v1462
        %1487 = vmatprep.subr.bf16.mxu0 0
        %1488 = vmatpush1.bf16.msra.mxu0 %v1464
        %1489 = vmatprep.subr.bf16.mxu0 0
        %1490 = vmatpush1.bf16.msra.mxu0 0
        %1491 = vmatprep.subr.bf16.mxu0 0
        %1492 = vmatpush1.bf16.msra.mxu0 0
        %1493 = vmatprep.subr.bf16.mxu0 0
        %1494 = vmatpush1.bf16.msra.mxu0 0
        %1495 = vmatprep.subr.bf16.mxu0 0
        %1496 = vmatpush1.bf16.msra.mxu0 0
        %1497 = vmatprep.subr.bf16.mxu0 0
        %1498 = vmatpush1.bf16.msra.mxu0 0
        %1499 = vmatprep.subr.bf16.mxu0 0
        %1500 = vmatpush1.bf16.msra.mxu0 0
        %1501 = vmatprep.subr.bf16.mxu0 0
        %1502 = vmatpush1.bf16.msra.mxu0 0
        %1503 = vmatprep.subr.bf16.mxu0 0
        %1504 = vmatpush1.bf16.msra.mxu0 0
        %1505 = vmatprep.mubr.bf16.mxu0 0
        %1506 = vmatmul.mubr.bf16.gmra.mrb[0].mxu0 %v1448
        %v1507 = vpop.f32.mrb[0].mxu0
        %v1508 = vadd.f32 0.0, %v1507
        %v1509 = vpop.f32.mrb[0].mxu0
        %v1510 = vpop.f32.mrb[0].mxu0
        %v1511 = vpop.f32.mrb[0].mxu0
        %1512 = vdwg.mxu0
        %1513 = vrot.lane.b32.xlu0 %v1033, 80
        %v1514 = vpop.permute.xlu0 %1513
        %1515 = vrot.lane.b32.xlu0 %v1034, 80
        %v1516 = vpop.permute.xlu0 %1515
        %1517 = vrot.lane.b32.xlu0 %v1035, 80
        %v1518 = vpop.permute.xlu0 %1517
        %1519 = vrot.lane.b32.xlu0 %v1036, 80
        %v1520 = vpop.permute.xlu0 %1519
        %1521 = vrot.lane.b32.xlu0 %v1037, 80
        %v1522 = vpop.permute.xlu0 %1521
        %1523 = vrot.lane.b32.xlu0 %v1038, 80
        %v1524 = vpop.permute.xlu0 %1523
        %1525 = vrot.lane.b32.xlu0 %v1039, 80
        %v1526 = vpop.permute.xlu0 %1525
        %1527 = vrot.lane.b32.xlu0 %v1040, 80
        %v1528 = vpop.permute.xlu0 %1527
        %1529 = vrot.lane.b32.xlu0 %v1041, 80
        %v1530 = vpop.permute.xlu0 %1529
        %v1532 = vsel %vm1057, %v1514, 0
        %v1535 = vsel %vm1057, %v1516, 0
        %v1538 = vsel %vm1057, %v1518, 0
        %v1541 = vsel %vm1057, %v1520, 0
        %v1544 = vsel %vm1057, %v1522, 0
        %v1547 = vsel %vm1057, %v1524, 0
        %v1550 = vsel %vm1057, %v1526, 0
        %v1553 = vsel %vm1057, %v1528, 0
        %v1556 = vsel %vm1057, %v1530, 0
        %1558 = vmatprep.subr.bf16.mxu0 0
        %1559 = vmatpush1.bf16.xpose.msra.mxu0 %v1535
        %1560 = vmatprep.subr.bf16.mxu0 0
        %1561 = vmatpush1.bf16.xpose.msra.mxu0 %v1538
        %1562 = vmatprep.subr.bf16.mxu0 0
        %1563 = vmatpush1.bf16.xpose.msra.mxu0 %v1541
        %1564 = vmatprep.subr.bf16.mxu0 0
        %1565 = vmatpush1.bf16.xpose.msra.mxu0 %v1544
        %1566 = vmatprep.subr.bf16.mxu0 0
        %1567 = vmatpush1.bf16.xpose.msra.mxu0 %v1547
        %1568 = vmatprep.subr.bf16.mxu0 0
        %1569 = vmatpush1.bf16.xpose.msra.mxu0 %v1550
        %1570 = vmatprep.subr.bf16.mxu0 0
        %1571 = vmatpush1.bf16.xpose.msra.mxu0 %v1553
        %1572 = vmatprep.subr.bf16.mxu0 0
        %1573 = vmatpush1.bf16.xpose.msra.mxu0 %v1556
        %1574 = vmatprep.subr.bf16.mxu0 0
        %1575 = vmatpush1.bf16.xpose.msra.mxu0 0
        %1576 = vmatprep.subr.bf16.mxu0 0
        %1577 = vmatpush1.bf16.xpose.msra.mxu0 0
        %1578 = vmatprep.subr.bf16.mxu0 0
        %1579 = vmatpush1.bf16.xpose.msra.mxu0 0
        %1580 = vmatprep.subr.bf16.mxu0 0
        %1581 = vmatpush1.bf16.xpose.msra.mxu0 0
        %1582 = vmatprep.subr.bf16.mxu0 0
        %1583 = vmatpush1.bf16.xpose.msra.mxu0 0
        %1584 = vmatprep.subr.bf16.mxu0 0
        %1585 = vmatpush1.bf16.xpose.msra.mxu0 0
        %1586 = vmatprep.subr.bf16.mxu0 0
        %1587 = vmatpush1.bf16.xpose.msra.mxu0 0
        %1588 = vmatprep.subr.bf16.mxu0 0
        %1589 = vmatpush1.bf16.xpose.msra.mxu0 0
        %1590 = vmatprep.mubr.bf16.mxu0 0
        %1591 = vmatmul.mubr.bf16.gmra.mrb[0].mxu0 %v1532
        %v1592 = vpop.f32.mrb[0].mxu0
        %v1593 = vadd.f32 %v1055, %v1592
        %v1594 = vpop.f32.mrb[0].mxu0
        %v1595 = vpop.f32.mrb[0].mxu0
        %v1596 = vpop.f32.mrb[0].mxu0
        %1597 = vdwg.mxu0
        %1598 = vmax.xlane.f32.xlu0 %v1593
        %v1599 = vpop.xlane.xlu0 %1598
        %v1600 = vsub.f32 %v1593, %v1599
        %v1601 = vmul.f32 %v1600, 1.442695
        %v1602 = vpow.pop %v1601
        %1603 = vadd.xlane.f32.xlu0 %v1602
        %v1604 = vpop.xlane.xlu0 %1603
        %v1605 = vrcp.pop %v1604
        %v1606 = vmul.f32 %v1602, %v1605
        %v1607 = vadd.f32 %v1447, %v1606
        %v1608 = vpack.c.bf16 %v1606, %v1606
        %1609 = vrot.lane.b32.xlu0 %v1042, 80
        %v1610 = vpop.permute.xlu0 %1609
        %1611 = vrot.lane.b32.xlu0 %v1043, 80
        %v1612 = vpop.permute.xlu0 %1611
        %1613 = vrot.lane.b32.xlu0 %v1044, 80
        %v1614 = vpop.permute.xlu0 %1613
        %1615 = vrot.lane.b32.xlu0 %v1045, 80
        %v1616 = vpop.permute.xlu0 %1615
        %1617 = vrot.lane.b32.xlu0 %v1046, 80
        %v1618 = vpop.permute.xlu0 %1617
        %1619 = vrot.lane.b32.xlu0 %v1047, 80
        %v1620 = vpop.permute.xlu0 %1619
        %1621 = vrot.lane.b32.xlu0 %v1048, 80
        %v1622 = vpop.permute.xlu0 %1621
        %1623 = vrot.lane.b32.xlu0 %v1049, 80
        %v1624 = vpop.permute.xlu0 %1623
        %1633 = vmatprep.subr.bf16.mxu0 0
        %1634 = vmatpush1.bf16.msra.mxu0 %v1610
        %1635 = vmatprep.subr.bf16.mxu0 0
        %1636 = vmatpush1.bf16.msra.mxu0 %v1612
        %1637 = vmatprep.subr.bf16.mxu0 0
        %1638 = vmatpush1.bf16.msra.mxu0 %v1614
        %1639 = vmatprep.subr.bf16.mxu0 0
        %1640 = vmatpush1.bf16.msra.mxu0 %v1616
        %1641 = vmatprep.subr.bf16.mxu0 0
        %1642 = vmatpush1.bf16.msra.mxu0 %v1618
        %1643 = vmatprep.subr.bf16.mxu0 0
        %1644 = vmatpush1.bf16.msra.mxu0 %v1620
        %1645 = vmatprep.subr.bf16.mxu0 0
        %1646 = vmatpush1.bf16.msra.mxu0 %v1622
        %1647 = vmatprep.subr.bf16.mxu0 0
        %1648 = vmatpush1.bf16.msra.mxu0 %v1624
        %1649 = vmatprep.subr.bf16.mxu0 0
        %1650 = vmatpush1.bf16.msra.mxu0 0
        %1651 = vmatprep.subr.bf16.mxu0 0
        %1652 = vmatpush1.bf16.msra.mxu0 0
        %1653 = vmatprep.subr.bf16.mxu0 0
        %1654 = vmatpush1.bf16.msra.mxu0 0
        %1655 = vmatprep.subr.bf16.mxu0 0
        %1656 = vmatpush1.bf16.msra.mxu0 0
        %1657 = vmatprep.subr.bf16.mxu0 0
        %1658 = vmatpush1.bf16.msra.mxu0 0
        %1659 = vmatprep.subr.bf16.mxu0 0
        %1660 = vmatpush1.bf16.msra.mxu0 0
        %1661 = vmatprep.subr.bf16.mxu0 0
        %1662 = vmatpush1.bf16.msra.mxu0 0
        %1663 = vmatprep.subr.bf16.mxu0 0
        %1664 = vmatpush1.bf16.msra.mxu0 0
        %1665 = vmatprep.mubr.bf16.mxu0 0
        %1666 = vmatmul.mubr.bf16.gmra.mrb[0].mxu0 %v1608
        %v1667 = vpop.f32.mrb[0].mxu0
        %v1668 = vadd.f32 0.0, %v1667
        %v1669 = vpop.f32.mrb[0].mxu0
        %v1670 = vpop.f32.mrb[0].mxu0
        %v1671 = vpop.f32.mrb[0].mxu0
        %1672 = vdwg.mxu0
        %v1673 = vmul.f32 %v1607, 0.25
        %1674 = vst [vmem:[%s483] sm:$0xff] %v1673
        %1676 = vrot.lane.b32.xlu0 %v1348, 16
        %v1677 = vpop.permute.xlu0 %1676
        %1680 = vrot.lane.b32.xlu0 %v1508, 32
        %v1681 = vpop.permute.xlu0 %1680
        %1684 = vrot.lane.b32.xlu0 %v1668, 48
        %v1685 = vpop.permute.xlu0 %1684
        %v1687 = vsel %vm1057, %v1171, %v1677
        %v1688 = vsel %vm546, %v1687, %v1681
        %v1689 = vsel %vm633, %v1688, %v1685
        %v1690 = vpack.c.bf16 %v1689, %v1689
        %v1691 = vld [vmem:[%s10] sm:$0xf]
        %v1692 = vld [vmem:[%s10 + $0x4] sm:$0xf]
        %v1693 = vld [vmem:[%s10 + $0x8] sm:$0xf]
        %v1694 = vld [vmem:[%s10 + $0xc] sm:$0xf]
        %v1695 = vld [vmem:[%s10 + $0x10] sm:$0xf]
        %v1696 = vld [vmem:[%s10 + $0x14] sm:$0xf]
        %v1697 = vld [vmem:[%s10 + $0x18] sm:$0xf]
        %v1698 = vld [vmem:[%s10 + $0x1c] sm:$0xf]
        %v1699 = vld [vmem:[%s11] sm:$0x1]
        %v1701 = vlaneseq
        %v1702 = vshrl.u32 %v1701, 7
        %v1703 = vsub.s32 0, %v1702
        %v1704 = vrot.slane %v1699, %v1703
        %v1714 = vunpack.c.l.b16 %v1691
        %v1715 = vunpack.c.l.b16 %v1692
        %v1716 = vunpack.c.l.b16 %v1693
        %v1717 = vunpack.c.l.b16 %v1694
        %v1718 = vunpack.c.l.b16 %v1695
        %v1719 = vunpack.c.l.b16 %v1696
        %v1720 = vunpack.c.l.b16 %v1697
        %v1721 = vunpack.c.l.b16 %v1698
        %v1722 = vpack.c.b16 %v1715, %v1714
        %v1723 = vpack.c.b16 %v1717, %v1716
        %v1724 = vpack.c.b16 %v1719, %v1718
        %v1725 = vpack.c.b16 %v1721, %v1720
        %vm1730 = vcmask 523264
        %v1732 = vsel %vm1730, %v1690, 0
        %1734 = vmatprep.subr.bf16.mxu0 0
        %1735 = vmatpush1.bf16.msra.mxu0 %v1722
        %1736 = vmatprep.subr.bf16.mxu0 0
        %1737 = vmatpush1.bf16.msra.mxu0 %v1723
        %1738 = vmatprep.subr.bf16.mxu0 0
        %1739 = vmatpush1.bf16.msra.mxu0 %v1724
        %1740 = vmatprep.subr.bf16.mxu0 0
        %1741 = vmatpush1.bf16.msra.mxu0 %v1725
        %1742 = vmatprep.subr.bf16.mxu0 0
        %1743 = vmatpush1.bf16.msra.mxu0 0
        %1744 = vmatprep.subr.bf16.mxu0 0
        %1745 = vmatpush1.bf16.msra.mxu0 0
        %1746 = vmatprep.subr.bf16.mxu0 0
        %1747 = vmatpush1.bf16.msra.mxu0 0
        %1748 = vmatprep.subr.bf16.mxu0 0
        %1749 = vmatpush1.bf16.msra.mxu0 0
        %1750 = vmatprep.subr.bf16.mxu0 0
        %1751 = vmatpush1.bf16.msra.mxu0 0
        %1752 = vmatprep.subr.bf16.mxu0 0
        %1753 = vmatpush1.bf16.msra.mxu0 0
        %1754 = vmatprep.subr.bf16.mxu0 0
        %1755 = vmatpush1.bf16.msra.mxu0 0
        %1756 = vmatprep.subr.bf16.mxu0 0
        %1757 = vmatpush1.bf16.msra.mxu0 0
        %1758 = vmatprep.subr.bf16.mxu0 0
        %1759 = vmatpush1.bf16.msra.mxu0 0
        %1760 = vmatprep.subr.bf16.mxu0 0
        %1761 = vmatpush1.bf16.msra.mxu0 0
        %1762 = vmatprep.subr.bf16.mxu0 0
        %1763 = vmatpush1.bf16.msra.mxu0 0
        %1764 = vmatprep.subr.bf16.mxu0 0
        %1765 = vmatpush1.bf16.msra.mxu0 0
        %1766 = vmatprep.mubr.bf16.mxu0 0
        %1767 = vmatmul.mubr.bf16.gmra.mrb[0].mxu0 %v1732
        %v1768 = vpop.f32.mrb[0].mxu0
        %v1769 = vadd.f32 %v1704, %v1768
        %v1770 = vpop.f32.mrb[0].mxu0
        %v1771 = vpop.f32.mrb[0].mxu0
        %v1772 = vpop.f32.mrb[0].mxu0
        %1773 = vdwg.mxu0
        %1774 = vst [vmem:[%s476] sm:$0xff] %v1769
        %s1775 = sand.u32 %s311, 1
        %s1776 = scalar_lea.sflag [#allocation3], %s1775
        %s1777 = sand.u32 %s311, 1
        %s1778 = smul.addr %s1777, 8
        %s1779 = scalar_lea.vmem [#allocation2], %s1778
        %s1780 = sand.u32 %s337, 1
        %s1781 = scalar_lea.sflag [#allocation5], %s1780
        %s1782 = sand.u32 %s337, 1
        %s1783 = smul.addr %s1782, 8
        %s1784 = scalar_lea.vmem [#allocation4], %s1783
        // Predicated region
        $region69: #{tpu_custom_call.1} parent=67 // pred_check
          %p1785 = pneg %p321
        $region70: #{tpu_custom_call.1} parent=67 // pred_check_branch
          %1787 = sbr.rel (%p1785) target = $region72
        $region71: #{tpu_custom_call.1} parent=67 // pred_region
          %s1789 = ssub.s32 128, 128
          %1790 = vsyncadd %s1776, %s1789
          %s1791 = smul.addr %s31, 128
          %s1792 = scalar_lea.hbm %s12, %s1791
          %s1794 = sshll.u32 %s1779, 4
          %s1795 = int_to_ptr.vmem [resolvable:$true] %s1794
          %1797 = dma.vmem_to_hbm [thread:$0]  %s1795, 128, %s1792, %s1776
        $region72: #{tpu_custom_call.1} parent=67 // pred_fallthru
          _
        // Predicated region
        $region73: #{tpu_custom_call.1} parent=67 // pred_check
          %p1798 = pneg %p347
        $region74: #{tpu_custom_call.1} parent=67 // pred_check_branch
          %1800 = sbr.rel (%p1798) target = $region76
        $region75: #{tpu_custom_call.1} parent=67 // pred_region
          %s1802 = ssub.s32 128, 128
          %1803 = vsyncadd %s1781, %s1802
          %s1804 = smul.addr %s31, 128
          %s1805 = scalar_lea.hbm %s13, %s1804
          %s1807 = sshll.u32 %s1784, 4
          %s1808 = int_to_ptr.vmem [resolvable:$true] %s1807
          %1810 = dma.vmem_to_hbm [thread:$0]  %s1808, 128, %s1805, %s1781
        $region76: #{tpu_custom_call.1} parent=67 // pred_fallthru
          _
      $region68: #{tpu_custom_call.1} parent=5 // pred_fallthru
        _
      %p1811 = scmp.le.s32.totalorder 2, %s26
      // Predicated region
      $region77: #{tpu_custom_call.1} parent=5 // pred_check
        %p1812 = pneg %p1811
      $region78: #{tpu_custom_call.1} parent=5 // pred_check_branch
        %1814 = sbr.rel (%p1812) target = $region80
      $region79: #{tpu_custom_call.1} parent=5 // pred_region
        %s1815 = ssub.s32 %s26, 2
        // Predicated region
        $region81: #{tpu_custom_call.1} parent=79 // pred_check
          %p1816 = pneg %p327
        $region82: #{tpu_custom_call.1} parent=79 // pred_check_branch
          %1818 = sbr.rel (%p1816) target = $region84
        $region83: #{tpu_custom_call.1} parent=79 // pred_region
          %s1819 = sand.u32 %s312, 1
          %s1820 = scalar_lea.sflag [#allocation3], %s1819
          %s1821 = sand.u32 %s312, 1
          %s1822 = smul.addr %s1821, 8
          %s1823 = scalar_lea.vmem [#allocation2], %s1822
          %1824 = dma.done %s1820, 128
        $region84: #{tpu_custom_call.1} parent=79 // pred_fallthru
          _
        // Predicated region
        $region85: #{tpu_custom_call.1} parent=79 // pred_check
          %p1825 = pneg %p353
        $region86: #{tpu_custom_call.1} parent=79 // pred_check_branch
          %1827 = sbr.rel (%p1825) target = $region88
        $region87: #{tpu_custom_call.1} parent=79 // pred_region
          %s1828 = sand.u32 %s338, 1
          %s1829 = scalar_lea.sflag [#allocation5], %s1828
          %s1830 = sand.u32 %s338, 1
          %s1831 = smul.addr %s1830, 8
          %s1832 = scalar_lea.vmem [#allocation4], %s1831
          %1833 = dma.done %s1829, 128
        $region88: #{tpu_custom_call.1} parent=79 // pred_fallthru
          _
      $region80: #{tpu_custom_call.1} parent=5 // pred_fallthru
        _
    $region6: #{tpu_custom_call.1} parent=1 // loop_footer
      %s30 = sadd.s32 1, %s26
    $region7: #{tpu_custom_call.1} parent=1 // loop_footer_branch
      %25 = sbr.rel target = $region3
    $region8: #{tpu_custom_call.1} parent=1 // loop_exit
      _
    %1834 = vsyncpa [#allocation3], 1
    %s1835 = scalar_lea.sflag [#allocation3], 1
    %1836 = vsyncpa %s1835, 1
    %1837 = vsyncpa [#allocation5], 1
    %s1838 = scalar_lea.sflag [#allocation5], 1
    %1839 = vsyncpa %s1838, 1

</llo_original>
